<compile_context>
chip_gen: v5e
topology: v5e:2x2
jax: 0.10.0
libtpu: 0.0.40
codegen_flags: <defaults>
</compile_context>

<pallas_src>
import functools

import jax
import jax.numpy as jnp
from jax.experimental import pallas as pl
from jax.experimental.pallas import tpu as pltpu

_MIB = 1 << 20


# --------------------------------------------------------------------------
# Chip-aware tile planning.
# --------------------------------------------------------------------------
def _vmem_capacity_bytes():
    """Physical VMEM per TensorCore, plus whether detection succeeded."""
    try:
        info = pltpu.get_tpu_info()
        cap = int(getattr(info, "vmem_capacity_bytes", 0) or 0)
        if cap > 0:
            return cap, True
    except Exception:
        pass
    return 64 * _MIB, False  # unknown: assume a small-VMEM (v7x-like) part


def _pick_tf(HF, H, wb, budget):
    """Largest HF tile s.t. double-buffered W1+W2 tiles use <= ~half budget."""
    tf_cap = max(128, (budget // 2) // (4 * H * wb))
    if tf_cap >= HF:
        return HF
    tf = max(128, (tf_cap // 128) * 128)
    while tf > 128 and HF % tf != 0:
        tf -= 128
    return tf if HF % tf == 0 else HF


def _pick_tm(T, H, E, tf, wb, budget, small_vmem):
    """Largest token tile fitting the remaining budget (>=2 tiles on v7x)."""
    wbuf = 4 * H * tf * wb                       # W1 + W2, double-buffered
    bbuf = 8 * tf + 8 * H + 8 * H * E            # b1, b2, router_w (dbl, f32)
    per_tm = H * (8 + 8 + 4 + wb) + 4 * max(E, 128)  # x, out, acc, x_bf16, gates
    tm = min(512, T, max(16, (budget - wbuf - bbuf) // per_tm))
    if small_vmem and T >= 32:
        tm = min(tm, max(16, T // 2))            # keep >=2 token tiles (2 TCs)
    if tm >= T:
        return T
    tm = max(16, (tm // 16) * 16)
    while tm > 16 and T % tm != 0:
        tm -= 16
    return tm if (T % tm == 0 and tm % 16 == 0) else T


# --------------------------------------------------------------------------
# Fused router + expert FFN kernel.
# Grid = (token tiles, experts, HF tiles).  The output block is resident
# across (expert, HF) and accumulates gated expert contributions; a per-expert
# f32 VMEM scratch accumulates the HF-tiled second matmul.
# --------------------------------------------------------------------------
def _moe_kernel(x_ref, rw_ref, w1_ref, b1_ref, w2_ref, b2_ref,
                out_ref, xb_ref, g_ref, acc_ref):
    e = pl.program_id(1)
    f = pl.program_id(2)
    nf = pl.num_programs(2)

    # Once per token tile: router softmax, bf16 activation cache, out init.
    @pl.when((e == 0) & (f == 0))
    def _():
        x32 = x_ref[...]                                             # [tm, H] f32
        logits = jnp.dot(x32, rw_ref[...],
                         preferred_element_type=jnp.float32)         # [tm, E]
        m = jnp.max(logits, axis=-1, keepdims=True)
        p = jnp.exp(logits - m)
        g_ref[...] = p * pl.reciprocal(jnp.sum(p, axis=-1, keepdims=True),
                                       approx=True)
        xb_ref[...] = x32.astype(xb_ref.dtype)
        out_ref[...] = jnp.zeros_like(out_ref)

    # Start the per-expert accumulator from the fc2 bias (folded in once).
    @pl.when(f == 0)
    def _():
        acc_ref[...] = jnp.broadcast_to(b2_ref[0], acc_ref.shape)

    h = jnp.dot(xb_ref[...], w1_ref[0],
                preferred_element_type=jnp.float32)                  # [tm, tf]
    h = jnp.maximum(h + b1_ref[0], 0.0)
    acc_ref[...] += jnp.dot(h.astype(w2_ref.dtype), w2_ref[0],
                            preferred_element_type=jnp.float32)      # [tm, H]

    # Last HF tile of this expert: select gate column e via one-hot reduce
    # (keeps the lane layout dense) and fold into the resident output.
    @pl.when(f == nf - 1)
    def _():
        num_e = g_ref.shape[-1]
        onehot = (jax.lax.broadcasted_iota(jnp.int32, (1, num_e), 1) == e)
        gate = jnp.sum(g_ref[...] * onehot.astype(jnp.float32),
                       axis=-1, keepdims=True)                       # [tm, 1]
        out_ref[...] += gate * acc_ref[...]


@functools.partial(jax.jit,
                   static_argnames=("tm", "tf", "vmem_limit", "weight_buffers"))
def _moe_forward_impl(x, router_w, w1, b1, w2, b2, *, tm, tf, vmem_limit,
                      weight_buffers):
    T, H = x.shape
    E, _, HF = w1.shape
    b1_r = b1.reshape(E, 1, HF).astype(jnp.float32)
    b2_r = b2.reshape(E, 1, H).astype(jnp.float32)
    rw = router_w.astype(jnp.float32)

    w_kw = {}
    if weight_buffers != 2:
        w_kw = dict(pipeline_mode=pl.Buffered(weight_buffers))

    grid_spec = pltpu.PrefetchScalarGridSpec(
        num_scalar_prefetch=0,
        grid=(T // tm, E, HF // tf),
        in_specs=[
            pl.BlockSpec((tm, H), lambda i, e, f: (i, 0)),           # x (f32)
            pl.BlockSpec((H, E), lambda i, e, f: (0, 0)),            # router W
            pl.BlockSpec((1, H, tf), lambda i, e, f: (e, 0, f), **w_kw),  # W1
            pl.BlockSpec((1, 1, tf), lambda i, e, f: (e, 0, f)),     # b1[e]
            pl.BlockSpec((1, tf, H), lambda i, e, f: (e, f, 0), **w_kw),  # W2
            pl.BlockSpec((1, 1, H), lambda i, e, f: (e, 0, 0)),      # b2[e]
        ],
        out_specs=pl.BlockSpec((tm, H), lambda i, e, f: (i, 0)),
        scratch_shapes=[
            pltpu.VMEM((tm, H), w1.dtype),      # bf16 activation cache
            pltpu.VMEM((tm, E), jnp.float32),   # router gates for this tile
            pltpu.VMEM((tm, H), jnp.float32),   # per-expert f32 accumulator
        ],
    )

    return pl.pallas_call(
        _moe_kernel,
        out_shape=jax.ShapeDtypeStruct((T, H), jnp.float32),
        grid_spec=grid_spec,
        compiler_params=pltpu.CompilerParams(
            dimension_semantics=("parallel", "arbitrary", "arbitrary"),
            vmem_limit_bytes=vmem_limit,
        ),
    )(x, rw, w1, b1_r, w2, b2_r)


def moe_forward(x, router_w, w1, b1, w2, b2, tm=None, tf=None):
    """Dense MoE forward: softmax(x @ router_w)-weighted sum of all experts.

    x: [T, H] f32.  router_w: [H, E].  w1: [E, H, HF].  b1: [E, HF].
    w2: [E, HF, H].  b2: [E, H].  Weights are pre-transposed vs torch's
    [out, in] Linear layout; store w1/w2 in bf16 persistently (cast once at
    init, not per forward) for the low-precision weight stream."""
    T, H = x.shape
    E, _, HF = w1.shape
    wb = jnp.dtype(w1.dtype).itemsize

    cap, detected = _vmem_capacity_bytes()
    small_vmem = cap < 96 * _MIB                # v7x-class (64 MiB/TC) / unknown
    budget = 48 * _MIB if small_vmem else 100 * _MIB

    tf = _pick_tf(HF, H, wb, budget) if tf is None else min(tf, HF)
    tm = _pick_tm(T, H, E, tf, wb, budget, small_vmem) if tm is None else min(tm, T)

    assert T % tm == 0 and (tm == T or tm % 16 == 0), "token tile misaligned"
    assert HF % tf == 0 and (tf == HF or tf % 128 == 0), "HF tile misaligned"

    # VMEM footprint estimate (double-buffered inputs + resident out + scratch).
    wbuf = 4 * H * tf * wb
    bbuf = 8 * tf + 8 * H + 8 * H * E
    per_tm = H * (8 + 8 + 4 + wb) + 4 * max(E, 128)
    est = wbuf + bbuf + tm * per_tm

    # Deeper weight buffering only on positively-detected small-VMEM (v7x)
    # parts, and only if headroom remains after the tm/tf sizing.
    weight_buffers = 2
    extra = 2 * H * tf * wb
    if detected and small_vmem and est + extra <= budget:
        weight_buffers = 3
        est += extra

    vmem_limit = int(min(budget, max(32 * _MIB, int(1.3 * est))))
    return _moe_forward_impl(x, router_w, w1, b1, w2, b2, tm=tm, tf=tf,
                             vmem_limit=vmem_limit,
                             weight_buffers=weight_buffers)


def moe_reference(x, router_w, w1, b1, w2, b2, param_dtype=jnp.bfloat16):
    """Plain-JAX reference mirroring the kernel's mixed precision
    (bf16 matmul inputs, f32 accumulation, f32 router/gates)."""
    gates = jax.nn.softmax(x @ router_w, axis=-1)                    # [T, E]
    xp, w1p, w2p = (a.astype(param_dtype) for a in (x, w1, w2))
    h = jnp.einsum("th,ehf->etf", xp, w1p,
                   preferred_element_type=jnp.float32)
    h = jnp.maximum(h + b1[:, None, :], 0.0)
    y = jnp.einsum("etf,efh->eth", h.astype(param_dtype), w2p,
                   preferred_element_type=jnp.float32)
    y = y + b2[:, None, :]
    return jnp.sum(jnp.transpose(gates)[:, :, None] * y, axis=0)


if __name__ == "__main__":
    # Small, lane-aligned shapes (multiples of 128 on the matmul dims).
    hidden_size = 128
    expansion_factor = 4
    n_experts = 8
    n_tokens = 256
    HF = hidden_size * expansion_factor

    key = jax.random.PRNGKey(0)
    ks = jax.random.split(key, 6)

    # Deterministic init mimicking torch.nn.Linear defaults (U(+-1/sqrt(fan_in))).
    def uinit(k, shape, fan_in):
        bound = 1.0 / jnp.sqrt(jnp.float32(fan_in))
        return jax.random.uniform(k, shape, jnp.float32, -bound, bound)

    x = jax.random.normal(ks[0], (n_tokens, hidden_size), jnp.float32)
    router_w = uinit(ks[1], (hidden_size, n_experts), hidden_size)     # [H, E]
    w1 = uinit(ks[2], (n_experts, hidden_size, HF), hidden_size)       # [E, H, HF]
    b1 = uinit(ks[3], (n_experts, HF), hidden_size)                    # [E, HF]
    w2 = uinit(ks[4], (n_experts, HF, hidden_size), HF)                # [E, HF, H]
    b2 = uinit(ks[5], (n_experts, hidden_size), HF)                    # [E, H]

    # Weights stored persistently in bf16 (cast ONCE here, not per forward);
    # x stays f32 and is cast to bf16 inside the kernel.
    w1_p = w1.astype(jnp.bfloat16)
    w2_p = w2.astype(jnp.bfloat16)

    out = moe_forward(x, router_w, w1_p, b1, w2_p, b2)
    out = jax.block_until_ready(out)

    ref = moe_reference(x, router_w, w1, b1, w2, b2)
    assert out.shape == (n_tokens, hidden_size)
    err = jnp.max(jnp.abs(out - ref))
    assert jnp.allclose(out, ref, atol=2e-2, rtol=2e-2), f"max abs err {err}"

    print("KERNEL_OK")
</pallas_src>

<mosaic_0001>
module attributes {stable_mosaic.version = 11 : i64} {
  func.func @_moe_kernel(%arg0: i32, %arg1: i32, %arg2: i32, %arg3: memref<128x128xf32, #tpu.memory_space<vmem>>, %arg4: memref<128x8xf32, #tpu.memory_space<vmem>>, %arg5: memref<1x128x512xbf16, #tpu.memory_space<vmem>>, %arg6: memref<1x1x512xf32, #tpu.memory_space<vmem>>, %arg7: memref<1x512x128xbf16, #tpu.memory_space<vmem>>, %arg8: memref<1x1x128xf32, #tpu.memory_space<vmem>>, %arg9: memref<128x128xf32, #tpu.memory_space<vmem>>, %arg10: memref<128x128xbf16, #tpu.memory_space<vmem>>, %arg11: memref<128x8xf32, #tpu.memory_space<vmem>>, %arg12: memref<128x128xf32, #tpu.memory_space<vmem>>) attributes {dimension_semantics = [#tpu.dimension_semantics<parallel>, #tpu.dimension_semantics<arbitrary>, #tpu.dimension_semantics<arbitrary>], iteration_bounds = array<i64: 2, 8, 1>, scalar_prefetch = 0 : i64, scratch_operands = 3 : i64, tpu.core_type = #tpu.core_type<tc>, window_params = [{transform_indices = @transform_0, window_bounds = array<i64: 128, 128>}, {pipeline_mode = #tpu.pipeline_mode<synchronous>, transform_indices = @transform_1, window_bounds = array<i64: 128, 8>}, {transform_indices = @transform_2, window_bounds = array<i64: 1, 128, 512>}, {transform_indices = @transform_3, window_bounds = array<i64: 1, 1, 512>}, {transform_indices = @transform_4, window_bounds = array<i64: 1, 512, 128>}, {transform_indices = @transform_5, window_bounds = array<i64: 1, 1, 128>}, {transform_indices = @transform_6, window_bounds = array<i64: 128, 128>}]} {
    %c0_i32 = arith.constant 0 : i32
    %0 = arith.cmpi eq, %arg1, %c0_i32 : i32
    %c0_i32_0 = arith.constant 0 : i32
    %1 = arith.cmpi eq, %arg2, %c0_i32_0 : i32
    %2 = arith.andi %0, %1 : i1
    %3 = arith.extui %2 : i1 to i32
    %c0_i32_1 = arith.constant 0 : i32
    %4 = arith.cmpi ne, %3, %c0_i32_1 : i32
    scf.if %4 {
      %c0_22 = arith.constant 0 : index
      %c0_23 = arith.constant 0 : index
      %28 = vector.load %arg3[%c0_22, %c0_23] : memref<128x128xf32, #tpu.memory_space<vmem>>, vector<128x128xf32>
      %c0_24 = arith.constant 0 : index
      %c0_25 = arith.constant 0 : index
      %29 = vector.load %arg4[%c0_24, %c0_25] : memref<128x8xf32, #tpu.memory_space<vmem>>, vector<128x8xf32>
      %cst_26 = arith.constant dense<0.000000e+00> : vector<128x8xf32>
      %30 = tpu.matmul %28, %29, %cst_26 {dimension_numbers = #tpu.dot_dimension_numbers<[1], [0], [0], [1], [0, 0, 1, 1], [], []>} : vector<128x128xf32>, vector<128x8xf32>, vector<128x8xf32> -> vector<128x8xf32>
      %cst_27 = arith.constant dense<0xFF800000> : vector<128xf32>
      %31 = vector.multi_reduction <maximumf>, %30, %cst_27 [1] : vector<128x8xf32> to vector<128xf32>
      %32 = vector.shape_cast %31 : vector<128xf32> to vector<128x1xf32>
      %33 = vector.broadcast %32 : vector<128x1xf32> to vector<128x8xf32>
      %34 = arith.subf %30, %33 : vector<128x8xf32>
      %35 = math.exp %34 : vector<128x8xf32>
      %cst_28 = arith.constant dense<0.000000e+00> : vector<128xf32>
      %36 = vector.multi_reduction <add>, %35, %cst_28 [1] : vector<128x8xf32> to vector<128xf32>
      %37 = vector.shape_cast %36 : vector<128xf32> to vector<128x1xf32>
      %38 = tpu.reciprocal %37 {approx = true} : vector<128x1xf32> -> vector<128x1xf32>
      %39 = vector.broadcast %38 : vector<128x1xf32> to vector<128x8xf32>
      %40 = arith.mulf %35, %39 : vector<128x8xf32>
      %c0_29 = arith.constant 0 : index
      %c0_30 = arith.constant 0 : index
      %41 = vector.load %arg11[%c0_29, %c0_30] : memref<128x8xf32, #tpu.memory_space<vmem>>, vector<128x8xf32>
      tpu.vector_store %arg11[%c0_29, %c0_30], %40 {strides = array<i32>} : memref<128x8xf32, #tpu.memory_space<vmem>>, vector<128x8xf32>,
      %42 = arith.truncf %28 : vector<128x128xf32> to vector<128x128xbf16>
      %c0_31 = arith.constant 0 : index
      %c0_32 = arith.constant 0 : index
      %43 = vector.load %arg10[%c0_31, %c0_32] : memref<128x128xbf16, #tpu.memory_space<vmem>>, vector<128x128xbf16>
      tpu.vector_store %arg10[%c0_31, %c0_32], %42 {strides = array<i32>} : memref<128x128xbf16, #tpu.memory_space<vmem>>, vector<128x128xbf16>,
      %cst_33 = arith.constant 0.000000e+00 : f32
      %44 = vector.broadcast %cst_33 : f32 to vector<128x128xf32>
      %c0_34 = arith.constant 0 : index
      %c0_35 = arith.constant 0 : index
      %45 = vector.load %arg9[%c0_34, %c0_35] : memref<128x128xf32, #tpu.memory_space<vmem>>, vector<128x128xf32>
      tpu.vector_store %arg9[%c0_34, %c0_35], %44 {strides = array<i32>} : memref<128x128xf32, #tpu.memory_space<vmem>>, vector<128x128xf32>,
    } else {
    }
    %c0_i32_2 = arith.constant 0 : i32
    %5 = arith.cmpi eq, %arg2, %c0_i32_2 : i32
    %6 = arith.extui %5 : i1 to i32
    %c0_i32_3 = arith.constant 0 : i32
    %7 = arith.cmpi ne, %6, %c0_i32_3 : i32
    scf.if %7 {
      %c0_22 = arith.constant 0 : index
      %c0_23 = arith.constant 0 : index
      %c0_24 = arith.constant 0 : index
      %28 = vector.load %arg8[%c0_22, %c0_23, %c0_24] : memref<1x1x128xf32, #tpu.memory_space<vmem>>, vector<1x1x128xf32>
      %29 = vector.shape_cast %28 : vector<1x1x128xf32> to vector<1x128xf32>
      %30 = vector.shape_cast %29 : vector<1x128xf32> to vector<1x128xf32>
      %31 = vector.broadcast %30 : vector<1x128xf32> to vector<128x128xf32>
      %c0_25 = arith.constant 0 : index
      %c0_26 = arith.constant 0 : index
      %32 = vector.load %arg12[%c0_25, %c0_26] : memref<128x128xf32, #tpu.memory_space<vmem>>, vector<128x128xf32>
      tpu.vector_store %arg12[%c0_25, %c0_26], %31 {strides = array<i32>} : memref<128x128xf32, #tpu.memory_space<vmem>>, vector<128x128xf32>,
    } else {
    }
    %c0 = arith.constant 0 : index
    %c0_4 = arith.constant 0 : index
    %8 = vector.load %arg10[%c0, %c0_4] : memref<128x128xbf16, #tpu.memory_space<vmem>>, vector<128x128xbf16>
    %c0_5 = arith.constant 0 : index
    %c0_6 = arith.constant 0 : index
    %c0_7 = arith.constant 0 : index
    %9 = vector.load %arg5[%c0_5, %c0_6, %c0_7] : memref<1x128x512xbf16, #tpu.memory_space<vmem>>, vector<1x128x512xbf16>
    %10 = vector.shape_cast %9 : vector<1x128x512xbf16> to vector<128x512xbf16>
    %cst = arith.constant dense<0.000000e+00> : vector<128x512xf32>
    %11 = tpu.matmul %8, %10, %cst {dimension_numbers = #tpu.dot_dimension_numbers<[1], [0], [0], [1], [0, 0, 1, 1], [], []>} : vector<128x128xbf16>, vector<128x512xbf16>, vector<128x512xf32> -> vector<128x512xf32>
    %c0_8 = arith.constant 0 : index
    %c0_9 = arith.constant 0 : index
    %c0_10 = arith.constant 0 : index
    %12 = vector.load %arg6[%c0_8, %c0_9, %c0_10] : memref<1x1x512xf32, #tpu.memory_space<vmem>>, vector<1x1x512xf32>
    %13 = vector.shape_cast %12 : vector<1x1x512xf32> to vector<1x512xf32>
    %14 = vector.broadcast %13 : vector<1x512xf32> to vector<128x512xf32>
    %15 = arith.addf %11, %14 : vector<128x512xf32>
    %cst_11 = arith.constant 0.000000e+00 : f32
    %16 = vector.broadcast %cst_11 : f32 to vector<128x512xf32>
    %17 = arith.maximumf %15, %16 : vector<128x512xf32>
    %c0_12 = arith.constant 0 : index
    %c0_13 = arith.constant 0 : index
    %18 = vector.load %arg12[%c0_12, %c0_13] : memref<128x128xf32, #tpu.memory_space<vmem>>, vector<128x128xf32>
    %19 = arith.truncf %17 : vector<128x512xf32> to vector<128x512xbf16>
    %c0_14 = arith.constant 0 : index
    %c0_15 = arith.constant 0 : index
    %c0_16 = arith.constant 0 : index
    %20 = vector.load %arg7[%c0_14, %c0_15, %c0_16] : memref<1x512x128xbf16, #tpu.memory_space<vmem>>, vector<1x512x128xbf16>
    %21 = vector.shape_cast %20 : vector<1x512x128xbf16> to vector<512x128xbf16>
    %cst_17 = arith.constant dense<0.000000e+00> : vector<128x128xf32>
    %22 = tpu.matmul %19, %21, %cst_17 {dimension_numbers = #tpu.dot_dimension_numbers<[1], [0], [0], [1], [0, 0, 1, 1], [], []>} : vector<128x512xbf16>, vector<512x128xbf16>, vector<128x128xf32> -> vector<128x128xf32>
    %23 = arith.addf %18, %22 : vector<128x128xf32>
    %c0_18 = arith.constant 0 : index
    %c0_19 = arith.constant 0 : index
    %24 = vector.load %arg12[%c0_18, %c0_19] : memref<128x128xf32, #tpu.memory_space<vmem>>, vector<128x128xf32>
    tpu.vector_store %arg12[%c0_18, %c0_19], %23 {strides = array<i32>} : memref<128x128xf32, #tpu.memory_space<vmem>>, vector<128x128xf32>,
    %c0_i32_20 = arith.constant 0 : i32
    %25 = arith.cmpi eq, %arg2, %c0_i32_20 : i32
    %26 = arith.extui %25 : i1 to i32
    %c0_i32_21 = arith.constant 0 : i32
    %27 = arith.cmpi ne, %26, %c0_i32_21 : i32
    scf.if %27 {
      %28 = tpu.iota {dimensions = array<i32: 1>} : vector<1x8xi32>
      %29 = vector.broadcast %arg1 : i32 to vector<1x8xi32>
      %30 = arith.cmpi eq, %28, %29 : vector<1x8xi32>
      %c0_22 = arith.constant 0 : index
      %c0_23 = arith.constant 0 : index
      %31 = vector.load %arg11[%c0_22, %c0_23] : memref<128x8xf32, #tpu.memory_space<vmem>>, vector<128x8xf32>
      %32 = arith.extui %30 : vector<1x8xi1> to vector<1x8xi32>
      %33 = arith.sitofp %32 : vector<1x8xi32> to vector<1x8xf32>
      %34 = vector.broadcast %33 : vector<1x8xf32> to vector<128x8xf32>
      %35 = arith.mulf %31, %34 : vector<128x8xf32>
      %cst_24 = arith.constant dense<0.000000e+00> : vector<128xf32>
      %36 = vector.multi_reduction <add>, %35, %cst_24 [1] : vector<128x8xf32> to vector<128xf32>
      %37 = vector.shape_cast %36 : vector<128xf32> to vector<128x1xf32>
      %c0_25 = arith.constant 0 : index
      %c0_26 = arith.constant 0 : index
      %38 = vector.load %arg9[%c0_25, %c0_26] : memref<128x128xf32, #tpu.memory_space<vmem>>, vector<128x128xf32>
      %c0_27 = arith.constant 0 : index
      %c0_28 = arith.constant 0 : index
      %39 = vector.load %arg12[%c0_27, %c0_28] : memref<128x128xf32, #tpu.memory_space<vmem>>, vector<128x128xf32>
      %40 = vector.broadcast %37 : vector<128x1xf32> to vector<128x128xf32>
      %41 = arith.mulf %40, %39 : vector<128x128xf32>
      %42 = arith.addf %38, %41 : vector<128x128xf32>
      %c0_29 = arith.constant 0 : index
      %c0_30 = arith.constant 0 : index
      %43 = vector.load %arg9[%c0_29, %c0_30] : memref<128x128xf32, #tpu.memory_space<vmem>>, vector<128x128xf32>
      tpu.vector_store %arg9[%c0_29, %c0_30], %42 {strides = array<i32>} : memref<128x128xf32, #tpu.memory_space<vmem>>, vector<128x128xf32>,
    } else {
    }
    return
  }
  func.func @transform_0(%arg0: i32, %arg1: i32, %arg2: i32) -> (i32, i32) {
    %c0_i32 = arith.constant 0 : i32
    %c0_i32_0 = arith.constant 0 : i32
    return %arg0, %c0_i32 : i32, i32
  }
  func.func @transform_1(%arg0: i32, %arg1: i32, %arg2: i32) -> (i32, i32) {
    %c0_i32 = arith.constant 0 : i32
    %c0_i32_0 = arith.constant 0 : i32
    %c0_i32_1 = arith.constant 0 : i32
    return %c0_i32, %c0_i32_0 : i32, i32
  }
  func.func @transform_2(%arg0: i32, %arg1: i32, %arg2: i32) -> (i32, i32, i32) {
    %c0_i32 = arith.constant 0 : i32
    %c0_i32_0 = arith.constant 0 : i32
    return %arg1, %c0_i32, %arg2 : i32, i32, i32
  }
  func.func @transform_3(%arg0: i32, %arg1: i32, %arg2: i32) -> (i32, i32, i32) {
    %c0_i32 = arith.constant 0 : i32
    %c0_i32_0 = arith.constant 0 : i32
    return %arg1, %c0_i32, %arg2 : i32, i32, i32
  }
  func.func @transform_4(%arg0: i32, %arg1: i32, %arg2: i32) -> (i32, i32, i32) {
    %c0_i32 = arith.constant 0 : i32
    %c0_i32_0 = arith.constant 0 : i32
    return %arg1, %arg2, %c0_i32 : i32, i32, i32
  }
  func.func @transform_5(%arg0: i32, %arg1: i32, %arg2: i32) -> (i32, i32, i32) {
    %c0_i32 = arith.constant 0 : i32
    %c0_i32_0 = arith.constant 0 : i32
    %c0_i32_1 = arith.constant 0 : i32
    return %arg1, %c0_i32, %c0_i32_0 : i32, i32, i32
  }
  func.func @transform_6(%arg0: i32, %arg1: i32, %arg2: i32) -> (i32, i32) {
    %c0_i32 = arith.constant 0 : i32
    %c0_i32_0 = arith.constant 0 : i32
    return %arg0, %c0_i32 : i32, i32
  }
}

</mosaic_0001>

<llo_original>
// kernel: _moe_forward_impl.1
$region0: #{_moe_forward_impl.1}
  #allocation0 [shape = 'u32[]', space=smem, size = 0x4, offset = 0x4, fixed_abs, tag = 'smem constant byte address 0x4 - core index']
  #allocation1 [shape = 'u32[72,128]{1,0:T(1,128)}', space=vmem, size = 0x9000, scoped, tag = 'internal scratch']
  #allocation2 [shape = 'bf16[128,128]{1,0:T(8,128)(2,1)}', space=vmem, size = 0x8000, scoped, tag = 'scratch operand']
  #allocation3 [shape = 'f32[128,8]{1,0:T(8,128)}', space=vmem, size = 0x10000, scoped, tag = 'scratch operand']
  #allocation4 [shape = 'f32[128,128]{1,0:T(8,128)}', space=vmem, size = 0x10000, scoped, tag = 'scratch operand']
  %s0 = inlined_call_operand.hbm [shape: f32[256,128], index: 0, kind: input, shape index: {}]
  %s1 = inlined_call_operand.vmem [shape: f32[128,8], index: 1, kind: input, shape index: {}]
  %s2 = inlined_call_operand.hbm [shape: bf16[8,128,512], index: 2, kind: input, shape index: {}]
  %s3 = inlined_call_operand.vmem [shape: f32[8,1,512], index: 3, kind: input, shape index: {}]
  %s4 = inlined_call_operand.hbm [shape: bf16[8,512,128], index: 4, kind: input, shape index: {}]
  %s5 = inlined_call_operand.vmem [shape: f32[8,1,128], index: 5, kind: input, shape index: {}]
  %s6 = inlined_call_operand.hbm [shape: f32[256,128], index: 6, kind: output, shape index: {}]
  %s7 = sld [smem:[#allocation0]]
  $region81: #{_moe_forward_impl.1} parent=0
    _
  %s9 = ssub.s32 1, %s7
  %s10 = scalar_select 0, %s9, %s7
  $region1: #{_moe_forward_impl.1} parent=0
    #allocation5 [shape = 'u8[131072]{0}', space=vmem, size = 0x20000, scoped, tag = 'input window, operand 0']
    #allocation6 [shape = 's32[2]{0}', space=sflag, size = 0x8, scoped, tag = 'scoped memory for _moe_forward_impl.1']
    #allocation7 [shape = 's32[2]{0}', space=sflag, size = 0x8, scoped, tag = 'scoped memory for _moe_forward_impl.1']
    #allocation8 [shape = 'u8[262144]{0}', space=vmem, size = 0x40000, scoped, tag = 'input window, operand 2']
    #allocation9 [shape = 's32[2]{0}', space=sflag, size = 0x8, scoped, tag = 'scoped memory for _moe_forward_impl.1']
    #allocation10 [shape = 'u8[262144]{0}', space=vmem, size = 0x40000, scoped, tag = 'input window, operand 4']
    #allocation11 [shape = 'u8[131072]{0}', space=vmem, size = 0x20000, scoped, tag = 'output window, operand 0']
    %11 = vsyncpa [#allocation6], 0
    %s12 = scalar_lea.sflag [#allocation6], 1
    %13 = vsyncpa %s12, 0
    %14 = vsyncpa [#allocation9], 0
    %s15 = scalar_lea.sflag [#allocation9], 1
    %16 = vsyncpa %s15, 0
    %17 = vsyncpa [#allocation7], 0
    %s18 = scalar_lea.sflag [#allocation7], 1
    %19 = vsyncpa %s18, 0
    loop: start=0, step=1, limit=18
    $region2: #{_moe_forward_impl.1} parent=1 // loop_pre_header
      _
    $region3: #{_moe_forward_impl.1} parent=1 // loop_header
      %s21 = sphi 0, %s25
      %p22 = scmp.ge.s32.totalorder %s21, 18
      %s28 = sphi 0, %s47
      %s29 = sphi 0, %s43
      %s30 = sphi 0, %s39
      %s31 = sphi 0, %s28
      %s32 = sphi 0, %s29
      %s33 = sphi 0, %s30
      %s34 = sphi 0, %s31
      %s35 = sphi 0, %s32
      %s36 = sphi 0, %s33
      %s50 = sphi 0, %s52
      %s53 = sphi 0, %s50
      %s54 = sphi 0, %s53
      %s70 = sphi 0, %s54
      %s74 = sphi 0, %s74
      %s76 = sphi 0, %s74
      %s77 = sphi 0, %s76
      %s91 = sphi 0, %s77
      %s99 = sphi 0, %s101
      %s102 = sphi 0, %s99
      %s103 = sphi 0, %s102
      %s119 = sphi 0, %s103
      %s127 = sphi 0, %s129
      %s130 = sphi 0, %s127
      %s131 = sphi 0, %s130
      %s147 = sphi 0, %s131
      %s155 = sphi 0, %s157
      %s158 = sphi 0, %s155
      %s159 = sphi 0, %s158
      %s175 = sphi 0, %s159
      %s181 = sphi 0, %s183
      %s184 = sphi 0, %s181
      %s185 = sphi 0, %s184
      %s201 = sphi 0, %s185
      %s207 = sphi 0, %s209
      %s210 = sphi 0, %s207
      %s211 = sphi 0, %s210
      %s227 = sphi 0, %s211
    $region4: #{_moe_forward_impl.1} parent=1 // loop_header_branch
      %24 = sbr.rel (%p22) target = $region8
    $region5: #{_moe_forward_impl.1} parent=1 // loop_body
      %s26 = ssub.s32 %s21, 1
      %s27 = ssub.s32 %s21, 2
      %s37 = sadd.s32 1, %s30
      %p38 = scmp.ge.s32.totalorder %s37, 1
      %s39 = scalar_select %p38, 0, %s37
      %s40 = sadd.s32 1, %s29
      %s41 = scalar_select %p38, %s40, %s29
      %p42 = scmp.ge.s32.totalorder %s41, 8
      %s43 = scalar_select %p42, 0, %s41
      %s44 = sadd.s32 1, %s28
      %s45 = scalar_select %p42, %s44, %s28
      %p46 = scmp.ge.s32.totalorder %s45, 2
      %s47 = scalar_select %p46, 0, %s45
      %s48 = ssub.s32 %s28, %s47
      %p49 = scmp.eq.s32.totalorder %s48, 0
      %s51 = sadd.s32 %s50, 1
      %s52 = scalar_select %p49, %s50, %s51
      %p55 = pneg %p49
      %p56 = scmp.eq.s32.totalorder %s21, 15
      %p57 = por %p55, %p56
      %p58 = scmp.ne.s32.totalorder %s50, %s53
      %p59 = scmp.eq.s32.totalorder %s21, 0
      %p60 = por %p58, %p59
      %p61 = scmp.ne.s32.totalorder %s50, %s53
      %p62 = scmp.eq.s32.totalorder %s26, 15
      %p63 = por %p61, %p62
      %p64 = scmp.ne.s32.totalorder %s53, %s54
      %p65 = scmp.eq.s32.totalorder %s26, 0
      %p66 = por %p64, %p65
      %p67 = scmp.ne.s32.totalorder %s53, %s54
      %p68 = scmp.eq.s32.totalorder %s27, 15
      %p69 = por %p67, %p68
      %p71 = scmp.ne.s32.totalorder %s54, %s70
      %p72 = scmp.eq.s32.totalorder %s27, 0
      %p73 = por %p71, %p72
      %s75 = sadd.s32 %s74, 1
      %p78 = scmp.eq.s32.totalorder %s21, 15
      %p79 = scmp.ne.s32.totalorder %s74, %s76
      %p80 = scmp.eq.s32.totalorder %s21, 0
      %p81 = por %p79, %p80
      %p82 = scmp.ne.s32.totalorder %s74, %s76
      %p83 = scmp.eq.s32.totalorder %s26, 15
      %p84 = por %p82, %p83
      %p85 = scmp.ne.s32.totalorder %s76, %s77
      %p86 = scmp.eq.s32.totalorder %s26, 0
      %p87 = por %p85, %p86
      %p88 = scmp.ne.s32.totalorder %s76, %s77
      %p89 = scmp.eq.s32.totalorder %s27, 15
      %p90 = por %p88, %p89
      %p92 = scmp.ne.s32.totalorder %s77, %s91
      %p93 = scmp.eq.s32.totalorder %s27, 0
      %p94 = por %p92, %p93
      %s95 = ssub.s32 %s29, %s43
      %s96 = ssub.s32 %s30, %s39
      %s97 = sor.u32 %s95, %s96
      %p98 = scmp.eq.s32.totalorder %s97, 0
      %s100 = sadd.s32 %s99, 1
      %s101 = scalar_select %p98, %s99, %s100
      %p104 = pneg %p98
      %p105 = scmp.eq.s32.totalorder %s21, 15
      %p106 = por %p104, %p105
      %p107 = scmp.ne.s32.totalorder %s99, %s102
      %p108 = scmp.eq.s32.totalorder %s21, 0
      %p109 = por %p107, %p108
      %p110 = scmp.ne.s32.totalorder %s99, %s102
      %p111 = scmp.eq.s32.totalorder %s26, 15
      %p112 = por %p110, %p111
      %p113 = scmp.ne.s32.totalorder %s102, %s103
      %p114 = scmp.eq.s32.totalorder %s26, 0
      %p115 = por %p113, %p114
      %p116 = scmp.ne.s32.totalorder %s102, %s103
      %p117 = scmp.eq.s32.totalorder %s27, 15
      %p118 = por %p116, %p117
      %p120 = scmp.ne.s32.totalorder %s103, %s119
      %p121 = scmp.eq.s32.totalorder %s27, 0
      %p122 = por %p120, %p121
      %s123 = ssub.s32 %s29, %s43
      %s124 = ssub.s32 %s30, %s39
      %s125 = sor.u32 %s123, %s124
      %p126 = scmp.eq.s32.totalorder %s125, 0
      %s128 = sadd.s32 %s127, 1
      %s129 = scalar_select %p126, %s127, %s128
      %p132 = pneg %p126
      %p133 = scmp.eq.s32.totalorder %s21, 15
      %p134 = por %p132, %p133
      %p135 = scmp.ne.s32.totalorder %s127, %s130
      %p136 = scmp.eq.s32.totalorder %s21, 0
      %p137 = por %p135, %p136
      %p138 = scmp.ne.s32.totalorder %s127, %s130
      %p139 = scmp.eq.s32.totalorder %s26, 15
      %p140 = por %p138, %p139
      %p141 = scmp.ne.s32.totalorder %s130, %s131
      %p142 = scmp.eq.s32.totalorder %s26, 0
      %p143 = por %p141, %p142
      %p144 = scmp.ne.s32.totalorder %s130, %s131
      %p145 = scmp.eq.s32.totalorder %s27, 15
      %p146 = por %p144, %p145
      %p148 = scmp.ne.s32.totalorder %s131, %s147
      %p149 = scmp.eq.s32.totalorder %s27, 0
      %p150 = por %p148, %p149
      %s151 = ssub.s32 %s29, %s43
      %s152 = ssub.s32 %s30, %s39
      %s153 = sor.u32 %s151, %s152
      %p154 = scmp.eq.s32.totalorder %s153, 0
      %s156 = sadd.s32 %s155, 1
      %s157 = scalar_select %p154, %s155, %s156
      %p160 = pneg %p154
      %p161 = scmp.eq.s32.totalorder %s21, 15
      %p162 = por %p160, %p161
      %p163 = scmp.ne.s32.totalorder %s155, %s158
      %p164 = scmp.eq.s32.totalorder %s21, 0
      %p165 = por %p163, %p164
      %p166 = scmp.ne.s32.totalorder %s155, %s158
      %p167 = scmp.eq.s32.totalorder %s26, 15
      %p168 = por %p166, %p167
      %p169 = scmp.ne.s32.totalorder %s158, %s159
      %p170 = scmp.eq.s32.totalorder %s26, 0
      %p171 = por %p169, %p170
      %p172 = scmp.ne.s32.totalorder %s158, %s159
      %p173 = scmp.eq.s32.totalorder %s27, 15
      %p174 = por %p172, %p173
      %p176 = scmp.ne.s32.totalorder %s159, %s175
      %p177 = scmp.eq.s32.totalorder %s27, 0
      %p178 = por %p176, %p177
      %s179 = ssub.s32 %s29, %s43
      %p180 = scmp.eq.s32.totalorder %s179, 0
      %s182 = sadd.s32 %s181, 1
      %s183 = scalar_select %p180, %s181, %s182
      %p186 = pneg %p180
      %p187 = scmp.eq.s32.totalorder %s21, 15
      %p188 = por %p186, %p187
      %p189 = scmp.ne.s32.totalorder %s181, %s184
      %p190 = scmp.eq.s32.totalorder %s21, 0
      %p191 = por %p189, %p190
      %p192 = scmp.ne.s32.totalorder %s181, %s184
      %p193 = scmp.eq.s32.totalorder %s26, 15
      %p194 = por %p192, %p193
      %p195 = scmp.ne.s32.totalorder %s184, %s185
      %p196 = scmp.eq.s32.totalorder %s26, 0
      %p197 = por %p195, %p196
      %p198 = scmp.ne.s32.totalorder %s184, %s185
      %p199 = scmp.eq.s32.totalorder %s27, 15
      %p200 = por %p198, %p199
      %p202 = scmp.ne.s32.totalorder %s185, %s201
      %p203 = scmp.eq.s32.totalorder %s27, 0
      %p204 = por %p202, %p203
      %s205 = ssub.s32 %s28, %s47
      %p206 = scmp.eq.s32.totalorder %s205, 0
      %s208 = sadd.s32 %s207, 1
      %s209 = scalar_select %p206, %s207, %s208
      %p212 = pneg %p206
      %p213 = scmp.eq.s32.totalorder %s21, 15
      %p214 = por %p212, %p213
      %p215 = scmp.ne.s32.totalorder %s207, %s210
      %p216 = scmp.eq.s32.totalorder %s21, 0
      %p217 = por %p215, %p216
      %p218 = scmp.ne.s32.totalorder %s207, %s210
      %p219 = scmp.eq.s32.totalorder %s26, 15
      %p220 = por %p218, %p219
      %p221 = scmp.ne.s32.totalorder %s210, %s211
      %p222 = scmp.eq.s32.totalorder %s26, 0
      %p223 = por %p221, %p222
      %p224 = scmp.ne.s32.totalorder %s210, %s211
      %p225 = scmp.eq.s32.totalorder %s27, 15
      %p226 = por %p224, %p225
      %p228 = scmp.ne.s32.totalorder %s211, %s227
      %p229 = scmp.eq.s32.totalorder %s27, 0
      %p230 = por %p228, %p229
      %p231 = scmp.le.s32.totalorder 1, %s21
      %p232 = scmp.lt.s32.totalorder %s21, 17
      %p233 = pnand %p231, %p232
      %p234 = pneg %p233
      // Predicated region
      $region9: #{_moe_forward_impl.1} parent=5 // pred_check
        _
      $region10: #{_moe_forward_impl.1} parent=5 // pred_check_branch
        %236 = sbr.rel (%p233) target = $region12
      $region11: #{_moe_forward_impl.1} parent=5 // pred_region
        %s237 = ssub.s32 %s21, 1
        // Predicated region
        $region13: #{_moe_forward_impl.1} parent=11 // pred_check
          %p238 = pneg %p87
        $region14: #{_moe_forward_impl.1} parent=11 // pred_check_branch
          %240 = sbr.rel (%p238) target = $region16
        $region15: #{_moe_forward_impl.1} parent=11 // pred_region
          _
        $region16: #{_moe_forward_impl.1} parent=11 // pred_fallthru
          _
      $region12: #{_moe_forward_impl.1} parent=5 // pred_fallthru
        _
      %p241 = scmp.lt.s32.totalorder %s21, 16
      // Predicated region
      $region17: #{_moe_forward_impl.1} parent=5 // pred_check
        %p242 = pneg %p241
      $region18: #{_moe_forward_impl.1} parent=5 // pred_check_branch
        %244 = sbr.rel (%p242) target = $region20
      $region19: #{_moe_forward_impl.1} parent=5 // pred_region
        // Predicated region
        $region21: #{_moe_forward_impl.1} parent=19 // pred_check
          %p245 = pneg %p60
        $region22: #{_moe_forward_impl.1} parent=19 // pred_check_branch
          %247 = sbr.rel (%p245) target = $region24
        $region23: #{_moe_forward_impl.1} parent=19 // pred_region
          %s248 = sand.u32 %s50, 1
          %s249 = scalar_lea.sflag [#allocation6], %s248
          %s250 = sand.u32 %s50, 1
          %s251 = smul.addr %s250, 128
          %s252 = scalar_lea.vmem [#allocation5], %s251
          %s253 = smul.u32 16, %s28
          %255 = vsyncadd %s249, 0
          %s256 = smul.addr %s253, 8
          %s257 = scalar_lea.hbm %s0, %s256
          %s258 = sshll.u32 %s257, 4
          %s259 = int_to_ptr.hbm [resolvable:$true] %s258
          %s260 = sshll.u32 %s252, 4
          %s261 = int_to_ptr.vmem [resolvable:$true] %s260
          %266 = dma.hbm_to_vmem [thread:$0]  %s259, 2048, %s261, %s249, 128, 128, 8
        $region24: #{_moe_forward_impl.1} parent=19 // pred_fallthru
          _
        // Predicated region
        $region25: #{_moe_forward_impl.1} parent=19 // pred_check
          %p267 = pneg %p109
        $region26: #{_moe_forward_impl.1} parent=19 // pred_check_branch
          %269 = sbr.rel (%p267) target = $region28
        $region27: #{_moe_forward_impl.1} parent=19 // pred_region
          %s270 = sand.u32 %s21, 1
          %s271 = scalar_lea.sflag [#allocation9], %s270
          %s272 = sand.u32 %s99, 1
          %s273 = smul.addr %s272, 256
          %s274 = scalar_lea.vmem [#allocation8], %s273
          %s275 = smul.u32 4, %s30
          %277 = vsyncadd %s271, 0
          %s278 = smul.addr %s29, 64
          %s279 = sadd.s32 %s275, %s278
          %s280 = smul.addr %s279, 4
          %s281 = scalar_lea.hbm %s2, %s280
          %s282 = sshll.u32 %s281, 4
          %s283 = int_to_ptr.hbm [resolvable:$true] %s282
          %s284 = sshll.u32 %s274, 4
          %s285 = int_to_ptr.vmem [resolvable:$true] %s284
          %290 = dma.hbm_to_vmem [thread:$0]  %s283, 4096, %s285, %s271, 256, 256, 16
        $region28: #{_moe_forward_impl.1} parent=19 // pred_fallthru
          _
        // Predicated region
        $region29: #{_moe_forward_impl.1} parent=19 // pred_check
          %p291 = pneg %p137
        $region30: #{_moe_forward_impl.1} parent=19 // pred_check_branch
          %293 = sbr.rel (%p291) target = $region32
        $region31: #{_moe_forward_impl.1} parent=19 // pred_region
          %s294 = smul.u32 4, %s30
          %p295 = scmp.lt.s32.totalorder %s29, 7
          %s296 = scalar_select %p295, %s29, 7
          %p297 = scmp.lt.s32.totalorder %s294, 3
          %s298 = scalar_select %p297, %s294, 3
          %s299 = smul.addr %s296, 4
          %s300 = sadd.s32 %s298, %s299
          %s301 = scalar_lea.vmem %s3, %s300
          %s302 = smul.u32 4, %s30
        $region32: #{_moe_forward_impl.1} parent=19 // pred_fallthru
          _
        // Predicated region
        $region33: #{_moe_forward_impl.1} parent=19 // pred_check
          %p303 = pneg %p165
        $region34: #{_moe_forward_impl.1} parent=19 // pred_check_branch
          %305 = sbr.rel (%p303) target = $region36
        $region35: #{_moe_forward_impl.1} parent=19 // pred_region
          %s306 = sand.u32 %s21, 1
          %s307 = scalar_lea.sflag [#allocation9], %s306
          %s308 = sand.u32 %s155, 1
          %s309 = smul.addr %s308, 256
          %s310 = scalar_lea.vmem [#allocation10], %s309
          %s311 = smul.u32 64, %s30
          %313 = vsyncadd %s307, 0
          %s314 = smul.addr %s29, 64
          %s315 = sadd.s32 %s311, %s314
          %s316 = smul.addr %s315, 4
          %s317 = scalar_lea.hbm %s4, %s316
          %s318 = sshll.u32 %s317, 4
          %s319 = int_to_ptr.hbm [resolvable:$true] %s318
          %s320 = sshll.u32 %s310, 4
          %s321 = int_to_ptr.vmem [resolvable:$true] %s320
          %326 = dma.hbm_to_vmem [thread:$0]  %s319, 4096, %s321, %s307, 64, 64, 4
        $region36: #{_moe_forward_impl.1} parent=19 // pred_fallthru
          _
        // Predicated region
        $region37: #{_moe_forward_impl.1} parent=19 // pred_check
          %p327 = pneg %p191
        $region38: #{_moe_forward_impl.1} parent=19 // pred_check_branch
          %329 = sbr.rel (%p327) target = $region40
        $region39: #{_moe_forward_impl.1} parent=19 // pred_region
          %p330 = scmp.lt.s32.totalorder %s29, 7
          %s331 = scalar_select %p330, %s29, 7
          %s332 = scalar_lea.vmem %s5, %s331
        $region40: #{_moe_forward_impl.1} parent=19 // pred_fallthru
          _
      $region20: #{_moe_forward_impl.1} parent=5 // pred_fallthru
        _
      %p333 = scmp.le.s32.totalorder 1, %s21
      %p334 = scmp.lt.s32.totalorder %s21, 17
      %p335 = pnand %p333, %p334
      %p336 = pneg %p335
      // Predicated region
      $region41: #{_moe_forward_impl.1} parent=5 // pred_check
        _
      $region42: #{_moe_forward_impl.1} parent=5 // pred_check_branch
        %338 = sbr.rel (%p335) target = $region44
      $region43: #{_moe_forward_impl.1} parent=5 // pred_region
        %s339 = ssub.s32 %s21, 1
        %s340 = sand.u32 %s53, 1
        %s341 = scalar_lea.sflag [#allocation6], %s340
        %s342 = sand.u32 %s53, 1
        %s343 = smul.addr %s342, 128
        %s344 = scalar_lea.vmem [#allocation5], %s343
        // Predicated region
        $region45: #{_moe_forward_impl.1} parent=43 // pred_check
          %p345 = pneg %p66
        $region46: #{_moe_forward_impl.1} parent=43 // pred_check_branch
          %347 = sbr.rel (%p345) target = $region48
        $region47: #{_moe_forward_impl.1} parent=43 // pred_region
          %349 = dma.done %s341, 2048
        $region48: #{_moe_forward_impl.1} parent=43 // pred_fallthru
          _
        %s350 = sand.u32 %s26, 1
        %s351 = scalar_lea.sflag [#allocation9], %s350
        %s352 = sand.u32 %s102, 1
        %s353 = smul.addr %s352, 256
        %s354 = scalar_lea.vmem [#allocation8], %s353
        // Predicated region
        $region49: #{_moe_forward_impl.1} parent=43 // pred_check
          %p355 = pneg %p115
        $region50: #{_moe_forward_impl.1} parent=43 // pred_check_branch
          %357 = sbr.rel (%p355) target = $region52
        $region51: #{_moe_forward_impl.1} parent=43 // pred_region
          %359 = dma.done %s351, 4096
        $region52: #{_moe_forward_impl.1} parent=43 // pred_fallthru
          _
        %s360 = sand.u32 %s26, 1
        %s361 = scalar_lea.sflag [#allocation9], %s360
        %s362 = sand.u32 %s158, 1
        %s363 = smul.addr %s362, 256
        %s364 = scalar_lea.vmem [#allocation10], %s363
        // Predicated region
        $region53: #{_moe_forward_impl.1} parent=43 // pred_check
          %p365 = pneg %p171
        $region54: #{_moe_forward_impl.1} parent=43 // pred_check_branch
          %367 = sbr.rel (%p365) target = $region56
        $region55: #{_moe_forward_impl.1} parent=43 // pred_region
          %369 = dma.done %s361, 4096
        $region56: #{_moe_forward_impl.1} parent=43 // pred_fallthru
          _
        %s370 = sand.u32 %s53, 1
        %s371 = scalar_lea.sflag [#allocation6], %s370
        %s372 = sand.u32 %s53, 1
        %s373 = smul.addr %s372, 128
        %s374 = scalar_lea.vmem [#allocation5], %s373
        %p375 = pneg %p66
        %p376 = pneg %p63
        %p377 = pneg %p87
        %p378 = pneg %p84
        %s379 = sand.u32 %s26, 1
        %s380 = scalar_lea.sflag [#allocation9], %s379
        %s381 = sand.u32 %s102, 1
        %s382 = smul.addr %s381, 256
        %s383 = scalar_lea.vmem [#allocation8], %s382
        %p384 = pneg %p115
        %p385 = pneg %p112
        %s386 = smul.u32 4, %s33
        %p387 = scmp.lt.s32.totalorder %s32, 7
        %s388 = scalar_select %p387, %s32, 7
        %p389 = scmp.lt.s32.totalorder %s386, 3
        %s390 = scalar_select %p389, %s386, 3
        %s391 = smul.addr %s388, 4
        %s392 = sadd.s32 %s390, %s391
        %s393 = scalar_lea.vmem %s3, %s392
        %p394 = pneg %p143
        %p395 = pneg %p140
        %s396 = sand.u32 %s26, 1
        %s397 = scalar_lea.sflag [#allocation9], %s396
        %s398 = sand.u32 %s158, 1
        %s399 = smul.addr %s398, 256
        %s400 = scalar_lea.vmem [#allocation10], %s399
        %p401 = pneg %p171
        %p402 = pneg %p168
        %p403 = scmp.lt.s32.totalorder %s32, 7
        %s404 = scalar_select %p403, %s32, 7
        %s405 = scalar_lea.vmem %s5, %s404
        %p406 = pneg %p197
        %p407 = pneg %p194
        %p408 = pneg %p223
        %p409 = pneg %p220
        %s410 = sand.u32 %s210, 1
        %s411 = scalar_lea.sflag [#allocation7], %s410
        %s412 = sand.u32 %s210, 1
        %s413 = smul.addr %s412, 128
        %s414 = scalar_lea.vmem [#allocation11], %s413
        %s415 = smul.u32 16, %s31
        %s416 = smul.u32 4, %s33
        %s417 = smul.u32 4, %s33
        %p418 = scmp.lt.s32.totalorder %s32, 7
        %s419 = scalar_select %p418, %s32, 7
        %p420 = scmp.lt.s32.totalorder %s417, 3
        %s421 = scalar_select %p420, %s417, 3
        %s422 = smul.addr %s419, 4
        %s423 = sadd.s32 %s421, %s422
        %s424 = scalar_lea.vmem %s3, %s423
        %s425 = smul.u32 4, %s33
        %s426 = smul.u32 64, %s33
        %p427 = scmp.lt.s32.totalorder %s32, 7
        %s428 = scalar_select %p427, %s32, 7
        %s429 = scalar_lea.vmem %s5, %s428
        %s430 = smul.u32 16, %s31
        %p431 = scmp.eq.s32.totalorder %s32, 0
        %p432 = scmp.eq.s32.totalorder %s33, 0
        %p433 = pnand %p431, %p432
        %p434 = pneg %p433
        // Predicated region
        $region57: #{_moe_forward_impl.1} parent=43 // pred_check
          _
        $region58: #{_moe_forward_impl.1} parent=43 // pred_check_branch
          %436 = sbr.rel (%p433) target = $region60
        $region59: #{_moe_forward_impl.1} parent=43 // pred_region
          %v437 = vld [vmem:[%s344] sm:$0xff]
          %v438 = vld [vmem:[%s344 + $0x8] sm:$0xff]
          %v439 = vld [vmem:[%s344 + $0x10] sm:$0xff]
          %v440 = vld [vmem:[%s344 + $0x18] sm:$0xff]
          %v441 = vld [vmem:[%s344 + $0x20] sm:$0xff]
          %v442 = vld [vmem:[%s344 + $0x28] sm:$0xff]
          %v443 = vld [vmem:[%s344 + $0x30] sm:$0xff]
          %v444 = vld [vmem:[%s344 + $0x38] sm:$0xff]
          %v445 = vld [vmem:[%s344 + $0x40] sm:$0xff]
          %v446 = vld [vmem:[%s344 + $0x48] sm:$0xff]
          %v447 = vld [vmem:[%s344 + $0x50] sm:$0xff]
          %v448 = vld [vmem:[%s344 + $0x58] sm:$0xff]
          %v449 = vld [vmem:[%s344 + $0x60] sm:$0xff]
          %v450 = vld [vmem:[%s344 + $0x68] sm:$0xff]
          %v451 = vld [vmem:[%s344 + $0x70] sm:$0xff]
          %v452 = vld [vmem:[%s344 + $0x78] sm:$0xff]
          %v453 = vld [vmem:[%s1] sm:$0xff]
          %v454 = vld [vmem:[%s1 + $0x8] sm:$0xff]
          %v455 = vld [vmem:[%s1 + $0x10] sm:$0xff]
          %v456 = vld [vmem:[%s1 + $0x18] sm:$0xff]
          %v457 = vld [vmem:[%s1 + $0x20] sm:$0xff]
          %v458 = vld [vmem:[%s1 + $0x28] sm:$0xff]
          %v459 = vld [vmem:[%s1 + $0x30] sm:$0xff]
          %v460 = vld [vmem:[%s1 + $0x38] sm:$0xff]
          %v461 = vld [vmem:[%s1 + $0x40] sm:$0xff]
          %v462 = vld [vmem:[%s1 + $0x48] sm:$0xff]
          %v463 = vld [vmem:[%s1 + $0x50] sm:$0xff]
          %v464 = vld [vmem:[%s1 + $0x58] sm:$0xff]
          %v465 = vld [vmem:[%s1 + $0x60] sm:$0xff]
          %v466 = vld [vmem:[%s1 + $0x68] sm:$0xff]
          %v467 = vld [vmem:[%s1 + $0x70] sm:$0xff]
          %v468 = vld [vmem:[%s1 + $0x78] sm:$0xff]
          %469 = vmatpush.msra.mxu0 %v468
          %470 = vmatpush.msra.mxu0 %v467
          %471 = vmatpush.msra.mxu0 %v466
          %472 = vmatpush.msra.mxu0 %v465
          %473 = vmatpush.msra.mxu0 %v464
          %474 = vmatpush.msra.mxu0 %v463
          %475 = vmatpush.msra.mxu0 %v462
          %476 = vmatpush.msra.mxu0 %v461
          %477 = vmatpush.msra.mxu0 %v460
          %478 = vmatpush.msra.mxu0 %v459
          %479 = vmatpush.msra.mxu0 %v458
          %480 = vmatpush.msra.mxu0 %v457
          %481 = vmatpush.msra.mxu0 %v456
          %482 = vmatpush.msra.mxu0 %v455
          %483 = vmatpush.msra.mxu0 %v454
          %484 = vmatpush.msra.mxu0 %v453
          %485 = vmatmul.f32.gmra.mxu0 %v437
          %v486 = vpop.f32.mrf.mxu0
          %v487 = vadd.f32 0.0, %v486
          %488 = vmatmul.f32.gmra.mxu0 %v438
          %v489 = vpop.f32.mrf.mxu0
          %v490 = vadd.f32 0.0, %v489
          %491 = vmatmul.f32.gmra.mxu0 %v439
          %v492 = vpop.f32.mrf.mxu0
          %v493 = vadd.f32 0.0, %v492
          %494 = vmatmul.f32.gmra.mxu0 %v440
          %v495 = vpop.f32.mrf.mxu0
          %v496 = vadd.f32 0.0, %v495
          %497 = vmatmul.f32.gmra.mxu0 %v441
          %v498 = vpop.f32.mrf.mxu0
          %v499 = vadd.f32 0.0, %v498
          %500 = vmatmul.f32.gmra.mxu0 %v442
          %v501 = vpop.f32.mrf.mxu0
          %v502 = vadd.f32 0.0, %v501
          %503 = vmatmul.f32.gmra.mxu0 %v443
          %v504 = vpop.f32.mrf.mxu0
          %v505 = vadd.f32 0.0, %v504
          %506 = vmatmul.f32.gmra.mxu0 %v444
          %v507 = vpop.f32.mrf.mxu0
          %v508 = vadd.f32 0.0, %v507
          %509 = vmatmul.f32.gmra.mxu0 %v445
          %v510 = vpop.f32.mrf.mxu0
          %v511 = vadd.f32 0.0, %v510
          %512 = vmatmul.f32.gmra.mxu0 %v446
          %v513 = vpop.f32.mrf.mxu0
          %v514 = vadd.f32 0.0, %v513
          %515 = vmatmul.f32.gmra.mxu0 %v447
          %v516 = vpop.f32.mrf.mxu0
          %v517 = vadd.f32 0.0, %v516
          %518 = vmatmul.f32.gmra.mxu0 %v448
          %v519 = vpop.f32.mrf.mxu0
          %v520 = vadd.f32 0.0, %v519
          %521 = vmatmul.f32.gmra.mxu0 %v449
          %v522 = vpop.f32.mrf.mxu0
          %v523 = vadd.f32 0.0, %v522
          %524 = vmatmul.f32.gmra.mxu0 %v450
          %v525 = vpop.f32.mrf.mxu0
          %v526 = vadd.f32 0.0, %v525
          %527 = vmatmul.f32.gmra.mxu0 %v451
          %v528 = vpop.f32.mrf.mxu0
          %v529 = vadd.f32 0.0, %v528
          %530 = vmatmul.f32.gmra.mxu0 %v452
          %v531 = vpop.f32.mrf.mxu0
          %v532 = vadd.f32 0.0, %v531
          %533 = vdwg.mxu0
          %vm534 = vcmask 64512
          %v535 = vsel %vm534, %v487, -inf
          %536 = vmax.xlane.f32.xlu0 %v535
          %v537 = vpop.xlane.xlu0 %536
          %v538 = vsel %vm534, %v490, -inf
          %539 = vmax.xlane.f32.xlu0 %v538
          %v540 = vpop.xlane.xlu0 %539
          %v541 = vsel %vm534, %v493, -inf
          %542 = vmax.xlane.f32.xlu0 %v541
          %v543 = vpop.xlane.xlu0 %542
          %v544 = vsel %vm534, %v496, -inf
          %545 = vmax.xlane.f32.xlu0 %v544
          %v546 = vpop.xlane.xlu0 %545
          %v547 = vsel %vm534, %v499, -inf
          %548 = vmax.xlane.f32.xlu0 %v547
          %v549 = vpop.xlane.xlu0 %548
          %v550 = vsel %vm534, %v502, -inf
          %551 = vmax.xlane.f32.xlu0 %v550
          %v552 = vpop.xlane.xlu0 %551
          %v553 = vsel %vm534, %v505, -inf
          %554 = vmax.xlane.f32.xlu0 %v553
          %v555 = vpop.xlane.xlu0 %554
          %v556 = vsel %vm534, %v508, -inf
          %557 = vmax.xlane.f32.xlu0 %v556
          %v558 = vpop.xlane.xlu0 %557
          %v559 = vsel %vm534, %v511, -inf
          %560 = vmax.xlane.f32.xlu0 %v559
          %v561 = vpop.xlane.xlu0 %560
          %v562 = vsel %vm534, %v514, -inf
          %563 = vmax.xlane.f32.xlu0 %v562
          %v564 = vpop.xlane.xlu0 %563
          %v565 = vsel %vm534, %v517, -inf
          %566 = vmax.xlane.f32.xlu0 %v565
          %v567 = vpop.xlane.xlu0 %566
          %v568 = vsel %vm534, %v520, -inf
          %569 = vmax.xlane.f32.xlu0 %v568
          %v570 = vpop.xlane.xlu0 %569
          %v571 = vsel %vm534, %v523, -inf
          %572 = vmax.xlane.f32.xlu0 %v571
          %v573 = vpop.xlane.xlu0 %572
          %v574 = vsel %vm534, %v526, -inf
          %575 = vmax.xlane.f32.xlu0 %v574
          %v576 = vpop.xlane.xlu0 %575
          %v577 = vsel %vm534, %v529, -inf
          %578 = vmax.xlane.f32.xlu0 %v577
          %v579 = vpop.xlane.xlu0 %578
          %v580 = vsel %vm534, %v532, -inf
          %581 = vmax.xlane.f32.xlu0 %v580
          %v582 = vpop.xlane.xlu0 %581
          %v583 = vsub.f32 %v487, %v537
          %v584 = vsub.f32 %v490, %v540
          %v585 = vsub.f32 %v493, %v543
          %v586 = vsub.f32 %v496, %v546
          %v587 = vsub.f32 %v499, %v549
          %v588 = vsub.f32 %v502, %v552
          %v589 = vsub.f32 %v505, %v555
          %v590 = vsub.f32 %v508, %v558
          %v591 = vsub.f32 %v511, %v561
          %v592 = vsub.f32 %v514, %v564
          %v593 = vsub.f32 %v517, %v567
          %v594 = vsub.f32 %v520, %v570
          %v595 = vsub.f32 %v523, %v573
          %v596 = vsub.f32 %v526, %v576
          %v597 = vsub.f32 %v529, %v579
          %v598 = vsub.f32 %v532, %v582
          %v599 = vmul.f32 %v583, 1.442695
          %v600 = vpow.pop %v599
          %v601 = vmul.f32 %v584, 1.442695
          %v602 = vpow.pop %v601
          %v603 = vmul.f32 %v585, 1.442695
          %v604 = vpow.pop %v603
          %v605 = vmul.f32 %v586, 1.442695
          %v606 = vpow.pop %v605
          %v607 = vmul.f32 %v587, 1.442695
          %v608 = vpow.pop %v607
          %v609 = vmul.f32 %v588, 1.442695
          %v610 = vpow.pop %v609
          %v611 = vmul.f32 %v589, 1.442695
          %v612 = vpow.pop %v611
          %v613 = vmul.f32 %v590, 1.442695
          %v614 = vpow.pop %v613
          %v615 = vmul.f32 %v591, 1.442695
          %v616 = vpow.pop %v615
          %v617 = vmul.f32 %v592, 1.442695
          %v618 = vpow.pop %v617
          %v619 = vmul.f32 %v593, 1.442695
          %v620 = vpow.pop %v619
          %v621 = vmul.f32 %v594, 1.442695
          %v622 = vpow.pop %v621
          %v623 = vmul.f32 %v595, 1.442695
          %v624 = vpow.pop %v623
          %v625 = vmul.f32 %v596, 1.442695
          %v626 = vpow.pop %v625
          %v627 = vmul.f32 %v597, 1.442695
          %v628 = vpow.pop %v627
          %v629 = vmul.f32 %v598, 1.442695
          %v630 = vpow.pop %v629
          %v631 = vsel %vm534, %v600, 0.0
          %632 = vadd.xlane.f32.xlu0 %v631
          %v633 = vpop.xlane.xlu0 %632
          %v634 = vsel %vm534, %v602, 0.0
          %635 = vadd.xlane.f32.xlu0 %v634
          %v636 = vpop.xlane.xlu0 %635
          %v637 = vsel %vm534, %v604, 0.0
          %638 = vadd.xlane.f32.xlu0 %v637
          %v639 = vpop.xlane.xlu0 %638
          %v640 = vsel %vm534, %v606, 0.0
          %641 = vadd.xlane.f32.xlu0 %v640
          %v642 = vpop.xlane.xlu0 %641
          %v643 = vsel %vm534, %v608, 0.0
          %644 = vadd.xlane.f32.xlu0 %v643
          %v645 = vpop.xlane.xlu0 %644
          %v646 = vsel %vm534, %v610, 0.0
          %647 = vadd.xlane.f32.xlu0 %v646
          %v648 = vpop.xlane.xlu0 %647
          %v649 = vsel %vm534, %v612, 0.0
          %650 = vadd.xlane.f32.xlu0 %v649
          %v651 = vpop.xlane.xlu0 %650
          %v652 = vsel %vm534, %v614, 0.0
          %653 = vadd.xlane.f32.xlu0 %v652
          %v654 = vpop.xlane.xlu0 %653
          %v655 = vsel %vm534, %v616, 0.0
          %656 = vadd.xlane.f32.xlu0 %v655
          %v657 = vpop.xlane.xlu0 %656
          %v658 = vsel %vm534, %v618, 0.0
          %659 = vadd.xlane.f32.xlu0 %v658
          %v660 = vpop.xlane.xlu0 %659
          %v661 = vsel %vm534, %v620, 0.0
          %662 = vadd.xlane.f32.xlu0 %v661
          %v663 = vpop.xlane.xlu0 %662
          %v664 = vsel %vm534, %v622, 0.0
          %665 = vadd.xlane.f32.xlu0 %v664
          %v666 = vpop.xlane.xlu0 %665
          %v667 = vsel %vm534, %v624, 0.0
          %668 = vadd.xlane.f32.xlu0 %v667
          %v669 = vpop.xlane.xlu0 %668
          %v670 = vsel %vm534, %v626, 0.0
          %671 = vadd.xlane.f32.xlu0 %v670
          %v672 = vpop.xlane.xlu0 %671
          %v673 = vsel %vm534, %v628, 0.0
          %674 = vadd.xlane.f32.xlu0 %v673
          %v675 = vpop.xlane.xlu0 %674
          %v676 = vsel %vm534, %v630, 0.0
          %677 = vadd.xlane.f32.xlu0 %v676
          %v678 = vpop.xlane.xlu0 %677
          %v679 = vrcp.pop %v633
          %v680 = vrcp.pop %v636
          %v681 = vrcp.pop %v639
          %v682 = vrcp.pop %v642
          %v683 = vrcp.pop %v645
          %v684 = vrcp.pop %v648
          %v685 = vrcp.pop %v651
          %v686 = vrcp.pop %v654
          %v687 = vrcp.pop %v657
          %v688 = vrcp.pop %v660
          %v689 = vrcp.pop %v663
          %v690 = vrcp.pop %v666
          %v691 = vrcp.pop %v669
          %v692 = vrcp.pop %v672
          %v693 = vrcp.pop %v675
          %v694 = vrcp.pop %v678
          %v695 = vmul.f32 %v600, %v679
          %v696 = vmul.f32 %v602, %v680
          %v697 = vmul.f32 %v604, %v681
          %v698 = vmul.f32 %v606, %v682
          %v699 = vmul.f32 %v608, %v683
          %v700 = vmul.f32 %v610, %v684
          %v701 = vmul.f32 %v612, %v685
          %v702 = vmul.f32 %v614, %v686
          %v703 = vmul.f32 %v616, %v687
          %v704 = vmul.f32 %v618, %v688
          %v705 = vmul.f32 %v620, %v689
          %v706 = vmul.f32 %v622, %v690
          %v707 = vmul.f32 %v624, %v691
          %v708 = vmul.f32 %v626, %v692
          %v709 = vmul.f32 %v628, %v693
          %v710 = vmul.f32 %v630, %v694
          %711 = vst.msk [vmem:[#allocation3] sm:$0xff] %vm534, %v695
          %712 = vst.msk [vmem:[#allocation3 + $0x8] sm:$0xff] %vm534, %v696
          %713 = vst.msk [vmem:[#allocation3 + $0x10] sm:$0xff] %vm534, %v697
          %714 = vst.msk [vmem:[#allocation3 + $0x18] sm:$0xff] %vm534, %v698
          %715 = vst.msk [vmem:[#allocation3 + $0x20] sm:$0xff] %vm534, %v699
          %716 = vst.msk [vmem:[#allocation3 + $0x28] sm:$0xff] %vm534, %v700
          %717 = vst.msk [vmem:[#allocation3 + $0x30] sm:$0xff] %vm534, %v701
          %718 = vst.msk [vmem:[#allocation3 + $0x38] sm:$0xff] %vm534, %v702
          %719 = vst.msk [vmem:[#allocation3 + $0x40] sm:$0xff] %vm534, %v703
          %720 = vst.msk [vmem:[#allocation3 + $0x48] sm:$0xff] %vm534, %v704
          %721 = vst.msk [vmem:[#allocation3 + $0x50] sm:$0xff] %vm534, %v705
          %722 = vst.msk [vmem:[#allocation3 + $0x58] sm:$0xff] %vm534, %v706
          %723 = vst.msk [vmem:[#allocation3 + $0x60] sm:$0xff] %vm534, %v707
          %724 = vst.msk [vmem:[#allocation3 + $0x68] sm:$0xff] %vm534, %v708
          %725 = vst.msk [vmem:[#allocation3 + $0x70] sm:$0xff] %vm534, %v709
          %726 = vst.msk [vmem:[#allocation3 + $0x78] sm:$0xff] %vm534, %v710
          %v727 = vpack.c.bf16 %v437, %v437
          %v728 = vpack.c.bf16 %v438, %v438
          %v729 = vpack.c.bf16 %v439, %v439
          %v730 = vpack.c.bf16 %v440, %v440
          %v731 = vpack.c.bf16 %v441, %v441
          %v732 = vpack.c.bf16 %v442, %v442
          %v733 = vpack.c.bf16 %v443, %v443
          %v734 = vpack.c.bf16 %v444, %v444
          %v735 = vpack.c.bf16 %v445, %v445
          %v736 = vpack.c.bf16 %v446, %v446
          %v737 = vpack.c.bf16 %v447, %v447
          %v738 = vpack.c.bf16 %v448, %v448
          %v739 = vpack.c.bf16 %v449, %v449
          %v740 = vpack.c.bf16 %v450, %v450
          %v741 = vpack.c.bf16 %v451, %v451
          %v742 = vpack.c.bf16 %v452, %v452
          %743 = vst [vmem:[#allocation2] sm:$0xf] %v727
          %744 = vst [vmem:[#allocation2 + $0x4] sm:$0xf] %v728
          %745 = vst [vmem:[#allocation2 + $0x8] sm:$0xf] %v729
          %746 = vst [vmem:[#allocation2 + $0xc] sm:$0xf] %v730
          %747 = vst [vmem:[#allocation2 + $0x10] sm:$0xf] %v731
          %748 = vst [vmem:[#allocation2 + $0x14] sm:$0xf] %v732
          %749 = vst [vmem:[#allocation2 + $0x18] sm:$0xf] %v733
          %750 = vst [vmem:[#allocation2 + $0x1c] sm:$0xf] %v734
          %751 = vst [vmem:[#allocation2 + $0x20] sm:$0xf] %v735
          %752 = vst [vmem:[#allocation2 + $0x24] sm:$0xf] %v736
          %753 = vst [vmem:[#allocation2 + $0x28] sm:$0xf] %v737
          %754 = vst [vmem:[#allocation2 + $0x2c] sm:$0xf] %v738
          %755 = vst [vmem:[#allocation2 + $0x30] sm:$0xf] %v739
          %756 = vst [vmem:[#allocation2 + $0x34] sm:$0xf] %v740
          %757 = vst [vmem:[#allocation2 + $0x38] sm:$0xf] %v741
          %758 = vst [vmem:[#allocation2 + $0x3c] sm:$0xf] %v742
          %759 = vst [vmem:[%s414] sm:$0xff] 0.0
          %760 = vst [vmem:[%s414 + $0x8] sm:$0xff] 0.0
          %761 = vst [vmem:[%s414 + $0x10] sm:$0xff] 0.0
          %762 = vst [vmem:[%s414 + $0x18] sm:$0xff] 0.0
          %763 = vst [vmem:[%s414 + $0x20] sm:$0xff] 0.0
          %764 = vst [vmem:[%s414 + $0x28] sm:$0xff] 0.0
          %765 = vst [vmem:[%s414 + $0x30] sm:$0xff] 0.0
          %766 = vst [vmem:[%s414 + $0x38] sm:$0xff] 0.0
          %767 = vst [vmem:[%s414 + $0x40] sm:$0xff] 0.0
          %768 = vst [vmem:[%s414 + $0x48] sm:$0xff] 0.0
          %769 = vst [vmem:[%s414 + $0x50] sm:$0xff] 0.0
          %770 = vst [vmem:[%s414 + $0x58] sm:$0xff] 0.0
          %771 = vst [vmem:[%s414 + $0x60] sm:$0xff] 0.0
          %772 = vst [vmem:[%s414 + $0x68] sm:$0xff] 0.0
          %773 = vst [vmem:[%s414 + $0x70] sm:$0xff] 0.0
          %774 = vst [vmem:[%s414 + $0x78] sm:$0xff] 0.0
        $region60: #{_moe_forward_impl.1} parent=43 // pred_fallthru
          _
        // Predicated region
        $region61: #{_moe_forward_impl.1} parent=43 // pred_check
          %p775 = pneg %p432
        $region62: #{_moe_forward_impl.1} parent=43 // pred_check_branch
          %777 = sbr.rel (%p775) target = $region64
        $region63: #{_moe_forward_impl.1} parent=43 // pred_region
          %v778 = vld [vmem:[%s429] sm:$0x1]
          %v780 = vperm.slane %v778, 0
          %782 = vst [vmem:[#allocation4] sm:$0xff] %v780
          %783 = vst [vmem:[#allocation4 + $0x8] sm:$0xff] %v780
          %784 = vst [vmem:[#allocation4 + $0x10] sm:$0xff] %v780
          %785 = vst [vmem:[#allocation4 + $0x18] sm:$0xff] %v780
          %786 = vst [vmem:[#allocation4 + $0x20] sm:$0xff] %v780
          %787 = vst [vmem:[#allocation4 + $0x28] sm:$0xff] %v780
          %788 = vst [vmem:[#allocation4 + $0x30] sm:$0xff] %v780
          %789 = vst [vmem:[#allocation4 + $0x38] sm:$0xff] %v780
          %790 = vst [vmem:[#allocation4 + $0x40] sm:$0xff] %v780
          %791 = vst [vmem:[#allocation4 + $0x48] sm:$0xff] %v780
          %792 = vst [vmem:[#allocation4 + $0x50] sm:$0xff] %v780
          %793 = vst [vmem:[#allocation4 + $0x58] sm:$0xff] %v780
          %794 = vst [vmem:[#allocation4 + $0x60] sm:$0xff] %v780
          %795 = vst [vmem:[#allocation4 + $0x68] sm:$0xff] %v780
          %796 = vst [vmem:[#allocation4 + $0x70] sm:$0xff] %v780
          %797 = vst [vmem:[#allocation4 + $0x78] sm:$0xff] %v780
        $region64: #{_moe_forward_impl.1} parent=43 // pred_fallthru
          _
        %v798 = vld [vmem:[#allocation2] sm:$0xf]
        %v799 = vld [vmem:[#allocation2 + $0x4] sm:$0xf]
        %v800 = vld [vmem:[#allocation2 + $0x8] sm:$0xf]
        %v801 = vld [vmem:[#allocation2 + $0xc] sm:$0xf]
        %v802 = vld [vmem:[#allocation2 + $0x10] sm:$0xf]
        %v803 = vld [vmem:[#allocation2 + $0x14] sm:$0xf]
        %v804 = vld [vmem:[#allocation2 + $0x18] sm:$0xf]
        %v805 = vld [vmem:[#allocation2 + $0x1c] sm:$0xf]
        %v806 = vld [vmem:[#allocation2 + $0x20] sm:$0xf]
        %v807 = vld [vmem:[#allocation2 + $0x24] sm:$0xf]
        %v808 = vld [vmem:[#allocation2 + $0x28] sm:$0xf]
        %v809 = vld [vmem:[#allocation2 + $0x2c] sm:$0xf]
        %v810 = vld [vmem:[#allocation2 + $0x30] sm:$0xf]
        %v811 = vld [vmem:[#allocation2 + $0x34] sm:$0xf]
        %v812 = vld [vmem:[#allocation2 + $0x38] sm:$0xf]
        %v813 = vld [vmem:[#allocation2 + $0x3c] sm:$0xf]
        %v814 = vld [vmem:[%s354] sm:$0xff]
        %v815 = vld [vmem:[%s354 + $0x8] sm:$0xff]
        %v816 = vld [vmem:[%s354 + $0x10] sm:$0xff]
        %v817 = vld [vmem:[%s354 + $0x18] sm:$0xff]
        %v818 = vld [vmem:[%s354 + $0x20] sm:$0xff]
        %v819 = vld [vmem:[%s354 + $0x28] sm:$0xff]
        %v820 = vld [vmem:[%s354 + $0x30] sm:$0xff]
        %v821 = vld [vmem:[%s354 + $0x38] sm:$0xff]
        %v822 = vld [vmem:[%s354 + $0x40] sm:$0xff]
        %v823 = vld [vmem:[%s354 + $0x48] sm:$0xff]
        %v824 = vld [vmem:[%s354 + $0x50] sm:$0xff]
        %v825 = vld [vmem:[%s354 + $0x58] sm:$0xff]
        %v826 = vld [vmem:[%s354 + $0x60] sm:$0xff]
        %v827 = vld [vmem:[%s354 + $0x68] sm:$0xff]
        %v828 = vld [vmem:[%s354 + $0x70] sm:$0xff]
        %v829 = vld [vmem:[%s354 + $0x78] sm:$0xff]
        %v830 = vld [vmem:[%s354 + $0x80] sm:$0xff]
        %v831 = vld [vmem:[%s354 + $0x88] sm:$0xff]
        %v832 = vld [vmem:[%s354 + $0x90] sm:$0xff]
        %v833 = vld [vmem:[%s354 + $0x98] sm:$0xff]
        %v834 = vld [vmem:[%s354 + $0xa0] sm:$0xff]
        %v835 = vld [vmem:[%s354 + $0xa8] sm:$0xff]
        %v836 = vld [vmem:[%s354 + $0xb0] sm:$0xff]
        %v837 = vld [vmem:[%s354 + $0xb8] sm:$0xff]
        %v838 = vld [vmem:[%s354 + $0xc0] sm:$0xff]
        %v839 = vld [vmem:[%s354 + $0xc8] sm:$0xff]
        %v840 = vld [vmem:[%s354 + $0xd0] sm:$0xff]
        %v841 = vld [vmem:[%s354 + $0xd8] sm:$0xff]
        %v842 = vld [vmem:[%s354 + $0xe0] sm:$0xff]
        %v843 = vld [vmem:[%s354 + $0xe8] sm:$0xff]
        %v844 = vld [vmem:[%s354 + $0xf0] sm:$0xff]
        %v845 = vld [vmem:[%s354 + $0xf8] sm:$0xff]
        %v846 = vld [vmem:[%s424] sm:$0xf]
        %v848 = vperm.slane %v846, 0
        %v849 = vperm.slane %v846, 1
        %v850 = vperm.slane %v846, 2
        %v851 = vperm.slane %v846, 3
        %v872 = vunpack.c.l.b16 %v798
        %v873 = vunpack.c.l.b16 %v799
        %v874 = vunpack.c.l.b16 %v800
        %v875 = vunpack.c.l.b16 %v801
        %v876 = vunpack.c.l.b16 %v802
        %v877 = vunpack.c.l.b16 %v803
        %v878 = vunpack.c.l.b16 %v804
        %v879 = vunpack.c.l.b16 %v805
        %v880 = vunpack.c.l.b16 %v806
        %v881 = vunpack.c.l.b16 %v807
        %v882 = vunpack.c.l.b16 %v808
        %v883 = vunpack.c.l.b16 %v809
        %v884 = vunpack.c.l.b16 %v810
        %v885 = vunpack.c.l.b16 %v811
        %v886 = vunpack.c.l.b16 %v812
        %v887 = vunpack.c.l.b16 %v813
        %v888 = vpack.c.b16 %v873, %v872
        %v889 = vpack.c.b16 %v875, %v874
        %v890 = vpack.c.b16 %v877, %v876
        %v891 = vpack.c.b16 %v879, %v878
        %v892 = vpack.c.b16 %v881, %v880
        %v893 = vpack.c.b16 %v883, %v882
        %v894 = vpack.c.b16 %v885, %v884
        %v895 = vpack.c.b16 %v887, %v886
        %v936 = vunpack.c.l.b16 %v814
        %v937 = vunpack.c.h.b16 %v814
        %v938 = vunpack.c.l.b16 %v815
        %v939 = vunpack.c.h.b16 %v815
        %v940 = vunpack.c.l.b16 %v816
        %v941 = vunpack.c.h.b16 %v816
        %v942 = vunpack.c.l.b16 %v817
        %v943 = vunpack.c.h.b16 %v817
        %v944 = vunpack.c.l.b16 %v818
        %v945 = vunpack.c.h.b16 %v818
        %v946 = vunpack.c.l.b16 %v819
        %v947 = vunpack.c.h.b16 %v819
        %v948 = vunpack.c.l.b16 %v820
        %v949 = vunpack.c.h.b16 %v820
        %v950 = vunpack.c.l.b16 %v821
        %v951 = vunpack.c.h.b16 %v821
        %v952 = vunpack.c.l.b16 %v822
        %v953 = vunpack.c.h.b16 %v822
        %v954 = vunpack.c.l.b16 %v823
        %v955 = vunpack.c.h.b16 %v823
        %v956 = vunpack.c.l.b16 %v824
        %v957 = vunpack.c.h.b16 %v824
        %v958 = vunpack.c.l.b16 %v825
        %v959 = vunpack.c.h.b16 %v825
        %v960 = vunpack.c.l.b16 %v826
        %v961 = vunpack.c.h.b16 %v826
        %v962 = vunpack.c.l.b16 %v827
        %v963 = vunpack.c.h.b16 %v827
        %v964 = vunpack.c.l.b16 %v828
        %v965 = vunpack.c.h.b16 %v828
        %v966 = vunpack.c.l.b16 %v829
        %v967 = vunpack.c.h.b16 %v829
        %v968 = vunpack.c.l.b16 %v830
        %v969 = vunpack.c.h.b16 %v830
        %v970 = vunpack.c.l.b16 %v831
        %v971 = vunpack.c.h.b16 %v831
        %v972 = vunpack.c.l.b16 %v832
        %v973 = vunpack.c.h.b16 %v832
        %v974 = vunpack.c.l.b16 %v833
        %v975 = vunpack.c.h.b16 %v833
        %v976 = vunpack.c.l.b16 %v834
        %v977 = vunpack.c.h.b16 %v834
        %v978 = vunpack.c.l.b16 %v835
        %v979 = vunpack.c.h.b16 %v835
        %v980 = vunpack.c.l.b16 %v836
        %v981 = vunpack.c.h.b16 %v836
        %v982 = vunpack.c.l.b16 %v837
        %v983 = vunpack.c.h.b16 %v837
        %v984 = vunpack.c.l.b16 %v838
        %v985 = vunpack.c.h.b16 %v838
        %v986 = vunpack.c.l.b16 %v839
        %v987 = vunpack.c.h.b16 %v839
        %v988 = vunpack.c.l.b16 %v840
        %v989 = vunpack.c.h.b16 %v840
        %v990 = vunpack.c.l.b16 %v841
        %v991 = vunpack.c.h.b16 %v841
        %v992 = vunpack.c.l.b16 %v842
        %v993 = vunpack.c.h.b16 %v842
        %v994 = vunpack.c.l.b16 %v843
        %v995 = vunpack.c.h.b16 %v843
        %v996 = vunpack.c.l.b16 %v844
        %v997 = vunpack.c.h.b16 %v844
        %v998 = vunpack.c.l.b16 %v845
        %v999 = vunpack.c.h.b16 %v845
        %v1000 = vpack.c.b16 %v940, %v936
        %v1001 = vpack.c.b16 %v941, %v937
        %v1002 = vpack.c.b16 %v942, %v938
        %v1003 = vpack.c.b16 %v943, %v939
        %v1004 = vpack.c.b16 %v948, %v944
        %v1005 = vpack.c.b16 %v949, %v945
        %v1006 = vpack.c.b16 %v950, %v946
        %v1007 = vpack.c.b16 %v951, %v947
        %v1008 = vpack.c.b16 %v956, %v952
        %v1009 = vpack.c.b16 %v957, %v953
        %v1010 = vpack.c.b16 %v958, %v954
        %v1011 = vpack.c.b16 %v959, %v955
        %v1012 = vpack.c.b16 %v964, %v960
        %v1013 = vpack.c.b16 %v965, %v961
        %v1014 = vpack.c.b16 %v966, %v962
        %v1015 = vpack.c.b16 %v967, %v963
        %v1016 = vpack.c.b16 %v972, %v968
        %v1017 = vpack.c.b16 %v973, %v969
        %v1018 = vpack.c.b16 %v974, %v970
        %v1019 = vpack.c.b16 %v975, %v971
        %v1020 = vpack.c.b16 %v980, %v976
        %v1021 = vpack.c.b16 %v981, %v977
        %v1022 = vpack.c.b16 %v982, %v978
        %v1023 = vpack.c.b16 %v983, %v979
        %v1024 = vpack.c.b16 %v988, %v984
        %v1025 = vpack.c.b16 %v989, %v985
        %v1026 = vpack.c.b16 %v990, %v986
        %v1027 = vpack.c.b16 %v991, %v987
        %v1028 = vpack.c.b16 %v996, %v992
        %v1029 = vpack.c.b16 %v997, %v993
        %v1030 = vpack.c.b16 %v998, %v994
        %v1031 = vpack.c.b16 %v999, %v995
        %1064 = vmatpush.bf16.msra.mxu0 %v1028
        %1065 = vmatpush.bf16.msra.mxu0 %v1024
        %1066 = vmatpush.bf16.msra.mxu0 %v1020
        %1067 = vmatpush.bf16.msra.mxu0 %v1016
        %1068 = vmatpush.bf16.msra.mxu0 %v1012
        %1069 = vmatpush.bf16.msra.mxu0 %v1008
        %1070 = vmatpush.bf16.msra.mxu0 %v1004
        %1071 = vmatpush.bf16.msra.mxu0 %v1000
        %1072 = vmatmul.bf16.gmra.mxu0 %v888
        %v1073 = vpop.f32.mrf.mxu0
        %v1074 = vadd.f32 %v848, %v1073
        %v1075 = vpop.f32.mrf.mxu0
        %v1076 = vadd.f32 %v848, %v1075
        %1077 = vmatmul.bf16.gmra.mxu0 %v889
        %v1078 = vpop.f32.mrf.mxu0
        %v1079 = vadd.f32 %v848, %v1078
        %v1080 = vpop.f32.mrf.mxu0
        %v1081 = vadd.f32 %v848, %v1080
        %1082 = vmatmul.bf16.gmra.mxu0 %v890
        %v1083 = vpop.f32.mrf.mxu0
        %v1084 = vadd.f32 %v848, %v1083
        %v1085 = vpop.f32.mrf.mxu0
        %v1086 = vadd.f32 %v848, %v1085
        %1087 = vmatmul.bf16.gmra.mxu0 %v891
        %v1088 = vpop.f32.mrf.mxu0
        %v1089 = vadd.f32 %v848, %v1088
        %v1090 = vpop.f32.mrf.mxu0
        %v1091 = vadd.f32 %v848, %v1090
        %1092 = vmatmul.bf16.gmra.mxu0 %v892
        %v1093 = vpop.f32.mrf.mxu0
        %v1094 = vadd.f32 %v848, %v1093
        %v1095 = vpop.f32.mrf.mxu0
        %v1096 = vadd.f32 %v848, %v1095
        %1097 = vmatmul.bf16.gmra.mxu0 %v893
        %v1098 = vpop.f32.mrf.mxu0
        %v1099 = vadd.f32 %v848, %v1098
        %v1100 = vpop.f32.mrf.mxu0
        %v1101 = vadd.f32 %v848, %v1100
        %1102 = vmatmul.bf16.gmra.mxu0 %v894
        %v1103 = vpop.f32.mrf.mxu0
        %v1104 = vadd.f32 %v848, %v1103
        %v1105 = vpop.f32.mrf.mxu0
        %v1106 = vadd.f32 %v848, %v1105
        %1107 = vmatmul.bf16.gmra.mxu0 %v895
        %v1108 = vpop.f32.mrf.mxu0
        %v1109 = vadd.f32 %v848, %v1108
        %v1110 = vpop.f32.mrf.mxu0
        %v1111 = vadd.f32 %v848, %v1110
        %1112 = vdwg.mxu0
        %1113 = vmatpush.bf16.msra.mxu0 %v1029
        %1114 = vmatpush.bf16.msra.mxu0 %v1025
        %1115 = vmatpush.bf16.msra.mxu0 %v1021
        %1116 = vmatpush.bf16.msra.mxu0 %v1017
        %1117 = vmatpush.bf16.msra.mxu0 %v1013
        %1118 = vmatpush.bf16.msra.mxu0 %v1009
        %1119 = vmatpush.bf16.msra.mxu0 %v1005
        %1120 = vmatpush.bf16.msra.mxu0 %v1001
        %1121 = vmatmul.bf16.gmra.mxu0 %v888
        %v1122 = vpop.f32.mrf.mxu0
        %v1123 = vadd.f32 %v849, %v1122
        %v1124 = vpop.f32.mrf.mxu0
        %v1125 = vadd.f32 %v849, %v1124
        %1126 = vmatmul.bf16.gmra.mxu0 %v889
        %v1127 = vpop.f32.mrf.mxu0
        %v1128 = vadd.f32 %v849, %v1127
        %v1129 = vpop.f32.mrf.mxu0
        %v1130 = vadd.f32 %v849, %v1129
        %1131 = vmatmul.bf16.gmra.mxu0 %v890
        %v1132 = vpop.f32.mrf.mxu0
        %v1133 = vadd.f32 %v849, %v1132
        %v1134 = vpop.f32.mrf.mxu0
        %v1135 = vadd.f32 %v849, %v1134
        %1136 = vmatmul.bf16.gmra.mxu0 %v891
        %v1137 = vpop.f32.mrf.mxu0
        %v1138 = vadd.f32 %v849, %v1137
        %v1139 = vpop.f32.mrf.mxu0
        %v1140 = vadd.f32 %v849, %v1139
        %1141 = vmatmul.bf16.gmra.mxu0 %v892
        %v1142 = vpop.f32.mrf.mxu0
        %v1143 = vadd.f32 %v849, %v1142
        %v1144 = vpop.f32.mrf.mxu0
        %v1145 = vadd.f32 %v849, %v1144
        %1146 = vmatmul.bf16.gmra.mxu0 %v893
        %v1147 = vpop.f32.mrf.mxu0
        %v1148 = vadd.f32 %v849, %v1147
        %v1149 = vpop.f32.mrf.mxu0
        %v1150 = vadd.f32 %v849, %v1149
        %1151 = vmatmul.bf16.gmra.mxu0 %v894
        %v1152 = vpop.f32.mrf.mxu0
        %v1153 = vadd.f32 %v849, %v1152
        %v1154 = vpop.f32.mrf.mxu0
        %v1155 = vadd.f32 %v849, %v1154
        %1156 = vmatmul.bf16.gmra.mxu0 %v895
        %v1157 = vpop.f32.mrf.mxu0
        %v1158 = vadd.f32 %v849, %v1157
        %v1159 = vpop.f32.mrf.mxu0
        %v1160 = vadd.f32 %v849, %v1159
        %1161 = vdwg.mxu0
        %1162 = vmatpush.bf16.msra.mxu0 %v1030
        %1163 = vmatpush.bf16.msra.mxu0 %v1026
        %1164 = vmatpush.bf16.msra.mxu0 %v1022
        %1165 = vmatpush.bf16.msra.mxu0 %v1018
        %1166 = vmatpush.bf16.msra.mxu0 %v1014
        %1167 = vmatpush.bf16.msra.mxu0 %v1010
        %1168 = vmatpush.bf16.msra.mxu0 %v1006
        %1169 = vmatpush.bf16.msra.mxu0 %v1002
        %1170 = vmatmul.bf16.gmra.mxu0 %v888
        %v1171 = vpop.f32.mrf.mxu0
        %v1172 = vadd.f32 %v850, %v1171
        %v1173 = vpop.f32.mrf.mxu0
        %v1174 = vadd.f32 %v850, %v1173
        %1175 = vmatmul.bf16.gmra.mxu0 %v889
        %v1176 = vpop.f32.mrf.mxu0
        %v1177 = vadd.f32 %v850, %v1176
        %v1178 = vpop.f32.mrf.mxu0
        %v1179 = vadd.f32 %v850, %v1178
        %1180 = vmatmul.bf16.gmra.mxu0 %v890
        %v1181 = vpop.f32.mrf.mxu0
        %v1182 = vadd.f32 %v850, %v1181
        %v1183 = vpop.f32.mrf.mxu0
        %v1184 = vadd.f32 %v850, %v1183
        %1185 = vmatmul.bf16.gmra.mxu0 %v891
        %v1186 = vpop.f32.mrf.mxu0
        %v1187 = vadd.f32 %v850, %v1186
        %v1188 = vpop.f32.mrf.mxu0
        %v1189 = vadd.f32 %v850, %v1188
        %1190 = vmatmul.bf16.gmra.mxu0 %v892
        %v1191 = vpop.f32.mrf.mxu0
        %v1192 = vadd.f32 %v850, %v1191
        %v1193 = vpop.f32.mrf.mxu0
        %v1194 = vadd.f32 %v850, %v1193
        %1195 = vmatmul.bf16.gmra.mxu0 %v893
        %v1196 = vpop.f32.mrf.mxu0
        %v1197 = vadd.f32 %v850, %v1196
        %v1198 = vpop.f32.mrf.mxu0
        %v1199 = vadd.f32 %v850, %v1198
        %1200 = vmatmul.bf16.gmra.mxu0 %v894
        %v1201 = vpop.f32.mrf.mxu0
        %v1202 = vadd.f32 %v850, %v1201
        %v1203 = vpop.f32.mrf.mxu0
        %v1204 = vadd.f32 %v850, %v1203
        %1205 = vmatmul.bf16.gmra.mxu0 %v895
        %v1206 = vpop.f32.mrf.mxu0
        %v1207 = vadd.f32 %v850, %v1206
        %v1208 = vpop.f32.mrf.mxu0
        %v1209 = vadd.f32 %v850, %v1208
        %1210 = vdwg.mxu0
        %1211 = vmatpush.bf16.msra.mxu0 %v1031
        %1212 = vmatpush.bf16.msra.mxu0 %v1027
        %1213 = vmatpush.bf16.msra.mxu0 %v1023
        %1214 = vmatpush.bf16.msra.mxu0 %v1019
        %1215 = vmatpush.bf16.msra.mxu0 %v1015
        %1216 = vmatpush.bf16.msra.mxu0 %v1011
        %1217 = vmatpush.bf16.msra.mxu0 %v1007
        %1218 = vmatpush.bf16.msra.mxu0 %v1003
        %1219 = vmatmul.bf16.gmra.mxu0 %v888
        %v1220 = vpop.f32.mrf.mxu0
        %v1221 = vadd.f32 %v851, %v1220
        %v1222 = vpop.f32.mrf.mxu0
        %v1223 = vadd.f32 %v851, %v1222
        %1224 = vmatmul.bf16.gmra.mxu0 %v889
        %v1225 = vpop.f32.mrf.mxu0
        %v1226 = vadd.f32 %v851, %v1225
        %v1227 = vpop.f32.mrf.mxu0
        %v1228 = vadd.f32 %v851, %v1227
        %1229 = vmatmul.bf16.gmra.mxu0 %v890
        %v1230 = vpop.f32.mrf.mxu0
        %v1231 = vadd.f32 %v851, %v1230
        %v1232 = vpop.f32.mrf.mxu0
        %v1233 = vadd.f32 %v851, %v1232
        %1234 = vmatmul.bf16.gmra.mxu0 %v891
        %v1235 = vpop.f32.mrf.mxu0
        %v1236 = vadd.f32 %v851, %v1235
        %v1237 = vpop.f32.mrf.mxu0
        %v1238 = vadd.f32 %v851, %v1237
        %1239 = vmatmul.bf16.gmra.mxu0 %v892
        %v1240 = vpop.f32.mrf.mxu0
        %v1241 = vadd.f32 %v851, %v1240
        %v1242 = vpop.f32.mrf.mxu0
        %v1243 = vadd.f32 %v851, %v1242
        %1244 = vmatmul.bf16.gmra.mxu0 %v893
        %v1245 = vpop.f32.mrf.mxu0
        %v1246 = vadd.f32 %v851, %v1245
        %v1247 = vpop.f32.mrf.mxu0
        %v1248 = vadd.f32 %v851, %v1247
        %1249 = vmatmul.bf16.gmra.mxu0 %v894
        %v1250 = vpop.f32.mrf.mxu0
        %v1251 = vadd.f32 %v851, %v1250
        %v1252 = vpop.f32.mrf.mxu0
        %v1253 = vadd.f32 %v851, %v1252
        %1254 = vmatmul.bf16.gmra.mxu0 %v895
        %v1255 = vpop.f32.mrf.mxu0
        %v1256 = vadd.f32 %v851, %v1255
        %v1257 = vpop.f32.mrf.mxu0
        %v1258 = vadd.f32 %v851, %v1257
        %1259 = vdwg.mxu0
        %v1260 = vmax.f32 %v1074, 0.0
        %v1261 = vmax.f32 %v1123, 0.0
        %v1262 = vmax.f32 %v1172, 0.0
        %v1263 = vmax.f32 %v1221, 0.0
        %v1264 = vmax.f32 %v1076, 0.0
        %v1265 = vmax.f32 %v1125, 0.0
        %v1266 = vmax.f32 %v1174, 0.0
        %v1267 = vmax.f32 %v1223, 0.0
        %v1268 = vmax.f32 %v1079, 0.0
        %v1269 = vmax.f32 %v1128, 0.0
        %v1270 = vmax.f32 %v1177, 0.0
        %v1271 = vmax.f32 %v1226, 0.0
        %v1272 = vmax.f32 %v1081, 0.0
        %v1273 = vmax.f32 %v1130, 0.0
        %v1274 = vmax.f32 %v1179, 0.0
        %v1275 = vmax.f32 %v1228, 0.0
        %v1276 = vmax.f32 %v1084, 0.0
        %v1277 = vmax.f32 %v1133, 0.0
        %v1278 = vmax.f32 %v1182, 0.0
        %v1279 = vmax.f32 %v1231, 0.0
        %v1280 = vmax.f32 %v1086, 0.0
        %v1281 = vmax.f32 %v1135, 0.0
        %v1282 = vmax.f32 %v1184, 0.0
        %v1283 = vmax.f32 %v1233, 0.0
        %v1284 = vmax.f32 %v1089, 0.0
        %v1285 = vmax.f32 %v1138, 0.0
        %v1286 = vmax.f32 %v1187, 0.0
        %v1287 = vmax.f32 %v1236, 0.0
        %v1288 = vmax.f32 %v1091, 0.0
        %v1289 = vmax.f32 %v1140, 0.0
        %v1290 = vmax.f32 %v1189, 0.0
        %v1291 = vmax.f32 %v1238, 0.0
        %v1292 = vmax.f32 %v1094, 0.0
        %v1293 = vmax.f32 %v1143, 0.0
        %v1294 = vmax.f32 %v1192, 0.0
        %v1295 = vmax.f32 %v1241, 0.0
        %v1296 = vmax.f32 %v1096, 0.0
        %v1297 = vmax.f32 %v1145, 0.0
        %v1298 = vmax.f32 %v1194, 0.0
        %v1299 = vmax.f32 %v1243, 0.0
        %v1300 = vmax.f32 %v1099, 0.0
        %v1301 = vmax.f32 %v1148, 0.0
        %v1302 = vmax.f32 %v1197, 0.0
        %v1303 = vmax.f32 %v1246, 0.0
        %v1304 = vmax.f32 %v1101, 0.0
        %v1305 = vmax.f32 %v1150, 0.0
        %v1306 = vmax.f32 %v1199, 0.0
        %v1307 = vmax.f32 %v1248, 0.0
        %v1308 = vmax.f32 %v1104, 0.0
        %v1309 = vmax.f32 %v1153, 0.0
        %v1310 = vmax.f32 %v1202, 0.0
        %v1311 = vmax.f32 %v1251, 0.0
        %v1312 = vmax.f32 %v1106, 0.0
        %v1313 = vmax.f32 %v1155, 0.0
        %v1314 = vmax.f32 %v1204, 0.0
        %v1315 = vmax.f32 %v1253, 0.0
        %v1316 = vmax.f32 %v1109, 0.0
        %v1317 = vmax.f32 %v1158, 0.0
        %v1318 = vmax.f32 %v1207, 0.0
        %v1319 = vmax.f32 %v1256, 0.0
        %v1320 = vmax.f32 %v1111, 0.0
        %v1321 = vmax.f32 %v1160, 0.0
        %v1322 = vmax.f32 %v1209, 0.0
        %v1323 = vmax.f32 %v1258, 0.0
        %v1324 = vld [vmem:[#allocation4] sm:$0xff]
        %v1325 = vld [vmem:[#allocation4 + $0x8] sm:$0xff]
        %v1326 = vld [vmem:[#allocation4 + $0x10] sm:$0xff]
        %v1327 = vld [vmem:[#allocation4 + $0x18] sm:$0xff]
        %v1328 = vld [vmem:[#allocation4 + $0x20] sm:$0xff]
        %v1329 = vld [vmem:[#allocation4 + $0x28] sm:$0xff]
        %v1330 = vld [vmem:[#allocation4 + $0x30] sm:$0xff]
        %v1331 = vld [vmem:[#allocation4 + $0x38] sm:$0xff]
        %v1332 = vld [vmem:[#allocation4 + $0x40] sm:$0xff]
        %v1333 = vld [vmem:[#allocation4 + $0x48] sm:$0xff]
        %v1334 = vld [vmem:[#allocation4 + $0x50] sm:$0xff]
        %v1335 = vld [vmem:[#allocation4 + $0x58] sm:$0xff]
        %v1336 = vld [vmem:[#allocation4 + $0x60] sm:$0xff]
        %v1337 = vld [vmem:[#allocation4 + $0x68] sm:$0xff]
        %v1338 = vld [vmem:[#allocation4 + $0x70] sm:$0xff]
        %v1339 = vld [vmem:[#allocation4 + $0x78] sm:$0xff]
        %v1340 = vpack.c.bf16 %v1264, %v1260
        %v1341 = vpack.c.bf16 %v1265, %v1261
        %v1342 = vpack.c.bf16 %v1266, %v1262
        %v1343 = vpack.c.bf16 %v1267, %v1263
        %v1344 = vpack.c.bf16 %v1272, %v1268
        %v1345 = vpack.c.bf16 %v1273, %v1269
        %v1346 = vpack.c.bf16 %v1274, %v1270
        %v1347 = vpack.c.bf16 %v1275, %v1271
        %v1348 = vpack.c.bf16 %v1280, %v1276
        %v1349 = vpack.c.bf16 %v1281, %v1277
        %v1350 = vpack.c.bf16 %v1282, %v1278
        %v1351 = vpack.c.bf16 %v1283, %v1279
        %v1352 = vpack.c.bf16 %v1288, %v1284
        %v1353 = vpack.c.bf16 %v1289, %v1285
        %v1354 = vpack.c.bf16 %v1290, %v1286
        %v1355 = vpack.c.bf16 %v1291, %v1287
        %v1356 = vpack.c.bf16 %v1296, %v1292
        %v1357 = vpack.c.bf16 %v1297, %v1293
        %v1358 = vpack.c.bf16 %v1298, %v1294
        %v1359 = vpack.c.bf16 %v1299, %v1295
        %v1360 = vpack.c.bf16 %v1304, %v1300
        %v1361 = vpack.c.bf16 %v1305, %v1301
        %v1362 = vpack.c.bf16 %v1306, %v1302
        %v1363 = vpack.c.bf16 %v1307, %v1303
        %v1364 = vpack.c.bf16 %v1312, %v1308
        %v1365 = vpack.c.bf16 %v1313, %v1309
        %v1366 = vpack.c.bf16 %v1314, %v1310
        %v1367 = vpack.c.bf16 %v1315, %v1311
        %v1368 = vpack.c.bf16 %v1320, %v1316
        %v1369 = vpack.c.bf16 %v1321, %v1317
        %v1370 = vpack.c.bf16 %v1322, %v1318
        %v1371 = vpack.c.bf16 %v1323, %v1319
        %v1372 = vld [vmem:[%s364] sm:$0xf]
        %v1373 = vld [vmem:[%s364 + $0x4] sm:$0xf]
        %v1374 = vld [vmem:[%s364 + $0x8] sm:$0xf]
        %v1375 = vld [vmem:[%s364 + $0xc] sm:$0xf]
        %v1376 = vld [vmem:[%s364 + $0x10] sm:$0xf]
        %v1377 = vld [vmem:[%s364 + $0x14] sm:$0xf]
        %v1378 = vld [vmem:[%s364 + $0x18] sm:$0xf]
        %v1379 = vld [vmem:[%s364 + $0x1c] sm:$0xf]
        %v1380 = vld [vmem:[%s364 + $0x20] sm:$0xf]
        %v1381 = vld [vmem:[%s364 + $0x24] sm:$0xf]
        %v1382 = vld [vmem:[%s364 + $0x28] sm:$0xf]
        %v1383 = vld [vmem:[%s364 + $0x2c] sm:$0xf]
        %v1384 = vld [vmem:[%s364 + $0x30] sm:$0xf]
        %v1385 = vld [vmem:[%s364 + $0x34] sm:$0xf]
        %v1386 = vld [vmem:[%s364 + $0x38] sm:$0xf]
        %v1387 = vld [vmem:[%s364 + $0x3c] sm:$0xf]
        %v1388 = vld [vmem:[%s364 + $0x40] sm:$0xf]
        %v1389 = vld [vmem:[%s364 + $0x44] sm:$0xf]
        %v1390 = vld [vmem:[%s364 + $0x48] sm:$0xf]
        %v1391 = vld [vmem:[%s364 + $0x4c] sm:$0xf]
        %v1392 = vld [vmem:[%s364 + $0x50] sm:$0xf]
        %v1393 = vld [vmem:[%s364 + $0x54] sm:$0xf]
        %v1394 = vld [vmem:[%s364 + $0x58] sm:$0xf]
        %v1395 = vld [vmem:[%s364 + $0x5c] sm:$0xf]
        %v1396 = vld [vmem:[%s364 + $0x60] sm:$0xf]
        %v1397 = vld [vmem:[%s364 + $0x64] sm:$0xf]
        %v1398 = vld [vmem:[%s364 + $0x68] sm:$0xf]
        %v1399 = vld [vmem:[%s364 + $0x6c] sm:$0xf]
        %v1400 = vld [vmem:[%s364 + $0x70] sm:$0xf]
        %v1401 = vld [vmem:[%s364 + $0x74] sm:$0xf]
        %v1402 = vld [vmem:[%s364 + $0x78] sm:$0xf]
        %v1403 = vld [vmem:[%s364 + $0x7c] sm:$0xf]
        %v1404 = vld [vmem:[%s364 + $0x80] sm:$0xf]
        %v1405 = vld [vmem:[%s364 + $0x84] sm:$0xf]
        %v1406 = vld [vmem:[%s364 + $0x88] sm:$0xf]
        %v1407 = vld [vmem:[%s364 + $0x8c] sm:$0xf]
        %v1408 = vld [vmem:[%s364 + $0x90] sm:$0xf]
        %v1409 = vld [vmem:[%s364 + $0x94] sm:$0xf]
        %v1410 = vld [vmem:[%s364 + $0x98] sm:$0xf]
        %v1411 = vld [vmem:[%s364 + $0x9c] sm:$0xf]
        %v1412 = vld [vmem:[%s364 + $0xa0] sm:$0xf]
        %v1413 = vld [vmem:[%s364 + $0xa4] sm:$0xf]
        %v1414 = vld [vmem:[%s364 + $0xa8] sm:$0xf]
        %v1415 = vld [vmem:[%s364 + $0xac] sm:$0xf]
        %v1416 = vld [vmem:[%s364 + $0xb0] sm:$0xf]
        %v1417 = vld [vmem:[%s364 + $0xb4] sm:$0xf]
        %v1418 = vld [vmem:[%s364 + $0xb8] sm:$0xf]
        %v1419 = vld [vmem:[%s364 + $0xbc] sm:$0xf]
        %v1420 = vld [vmem:[%s364 + $0xc0] sm:$0xf]
        %v1421 = vld [vmem:[%s364 + $0xc4] sm:$0xf]
        %v1422 = vld [vmem:[%s364 + $0xc8] sm:$0xf]
        %v1423 = vld [vmem:[%s364 + $0xcc] sm:$0xf]
        %v1424 = vld [vmem:[%s364 + $0xd0] sm:$0xf]
        %v1425 = vld [vmem:[%s364 + $0xd4] sm:$0xf]
        %v1426 = vld [vmem:[%s364 + $0xd8] sm:$0xf]
        %v1427 = vld [vmem:[%s364 + $0xdc] sm:$0xf]
        %v1428 = vld [vmem:[%s364 + $0xe0] sm:$0xf]
        %v1429 = vld [vmem:[%s364 + $0xe4] sm:$0xf]
        %v1430 = vld [vmem:[%s364 + $0xe8] sm:$0xf]
        %v1431 = vld [vmem:[%s364 + $0xec] sm:$0xf]
        %v1432 = vld [vmem:[%s364 + $0xf0] sm:$0xf]
        %v1433 = vld [vmem:[%s364 + $0xf4] sm:$0xf]
        %v1434 = vld [vmem:[%s364 + $0xf8] sm:$0xf]
        %v1435 = vld [vmem:[%s364 + $0xfc] sm:$0xf]
        %v1500 = vunpack.c.l.b16 %v1372
        %v1501 = vunpack.c.l.b16 %v1373
        %v1502 = vunpack.c.l.b16 %v1374
        %v1503 = vunpack.c.l.b16 %v1375
        %v1504 = vunpack.c.l.b16 %v1376
        %v1505 = vunpack.c.l.b16 %v1377
        %v1506 = vunpack.c.l.b16 %v1378
        %v1507 = vunpack.c.l.b16 %v1379
        %v1508 = vunpack.c.l.b16 %v1380
        %v1509 = vunpack.c.l.b16 %v1381
        %v1510 = vunpack.c.l.b16 %v1382
        %v1511 = vunpack.c.l.b16 %v1383
        %v1512 = vunpack.c.l.b16 %v1384
        %v1513 = vunpack.c.l.b16 %v1385
        %v1514 = vunpack.c.l.b16 %v1386
        %v1515 = vunpack.c.l.b16 %v1387
        %v1516 = vunpack.c.l.b16 %v1388
        %v1517 = vunpack.c.l.b16 %v1389
        %v1518 = vunpack.c.l.b16 %v1390
        %v1519 = vunpack.c.l.b16 %v1391
        %v1520 = vunpack.c.l.b16 %v1392
        %v1521 = vunpack.c.l.b16 %v1393
        %v1522 = vunpack.c.l.b16 %v1394
        %v1523 = vunpack.c.l.b16 %v1395
        %v1524 = vunpack.c.l.b16 %v1396
        %v1525 = vunpack.c.l.b16 %v1397
        %v1526 = vunpack.c.l.b16 %v1398
        %v1527 = vunpack.c.l.b16 %v1399
        %v1528 = vunpack.c.l.b16 %v1400
        %v1529 = vunpack.c.l.b16 %v1401
        %v1530 = vunpack.c.l.b16 %v1402
        %v1531 = vunpack.c.l.b16 %v1403
        %v1532 = vunpack.c.l.b16 %v1404
        %v1533 = vunpack.c.l.b16 %v1405
        %v1534 = vunpack.c.l.b16 %v1406
        %v1535 = vunpack.c.l.b16 %v1407
        %v1536 = vunpack.c.l.b16 %v1408
        %v1537 = vunpack.c.l.b16 %v1409
        %v1538 = vunpack.c.l.b16 %v1410
        %v1539 = vunpack.c.l.b16 %v1411
        %v1540 = vunpack.c.l.b16 %v1412
        %v1541 = vunpack.c.l.b16 %v1413
        %v1542 = vunpack.c.l.b16 %v1414
        %v1543 = vunpack.c.l.b16 %v1415
        %v1544 = vunpack.c.l.b16 %v1416
        %v1545 = vunpack.c.l.b16 %v1417
        %v1546 = vunpack.c.l.b16 %v1418
        %v1547 = vunpack.c.l.b16 %v1419
        %v1548 = vunpack.c.l.b16 %v1420
        %v1549 = vunpack.c.l.b16 %v1421
        %v1550 = vunpack.c.l.b16 %v1422
        %v1551 = vunpack.c.l.b16 %v1423
        %v1552 = vunpack.c.l.b16 %v1424
        %v1553 = vunpack.c.l.b16 %v1425
        %v1554 = vunpack.c.l.b16 %v1426
        %v1555 = vunpack.c.l.b16 %v1427
        %v1556 = vunpack.c.l.b16 %v1428
        %v1557 = vunpack.c.l.b16 %v1429
        %v1558 = vunpack.c.l.b16 %v1430
        %v1559 = vunpack.c.l.b16 %v1431
        %v1560 = vunpack.c.l.b16 %v1432
        %v1561 = vunpack.c.l.b16 %v1433
        %v1562 = vunpack.c.l.b16 %v1434
        %v1563 = vunpack.c.l.b16 %v1435
        %v1564 = vpack.c.b16 %v1501, %v1500
        %v1565 = vpack.c.b16 %v1503, %v1502
        %v1566 = vpack.c.b16 %v1505, %v1504
        %v1567 = vpack.c.b16 %v1507, %v1506
        %v1568 = vpack.c.b16 %v1509, %v1508
        %v1569 = vpack.c.b16 %v1511, %v1510
        %v1570 = vpack.c.b16 %v1513, %v1512
        %v1571 = vpack.c.b16 %v1515, %v1514
        %v1572 = vpack.c.b16 %v1517, %v1516
        %v1573 = vpack.c.b16 %v1519, %v1518
        %v1574 = vpack.c.b16 %v1521, %v1520
        %v1575 = vpack.c.b16 %v1523, %v1522
        %v1576 = vpack.c.b16 %v1525, %v1524
        %v1577 = vpack.c.b16 %v1527, %v1526
        %v1578 = vpack.c.b16 %v1529, %v1528
        %v1579 = vpack.c.b16 %v1531, %v1530
        %v1580 = vpack.c.b16 %v1533, %v1532
        %v1581 = vpack.c.b16 %v1535, %v1534
        %v1582 = vpack.c.b16 %v1537, %v1536
        %v1583 = vpack.c.b16 %v1539, %v1538
        %v1584 = vpack.c.b16 %v1541, %v1540
        %v1585 = vpack.c.b16 %v1543, %v1542
        %v1586 = vpack.c.b16 %v1545, %v1544
        %v1587 = vpack.c.b16 %v1547, %v1546
        %v1588 = vpack.c.b16 %v1549, %v1548
        %v1589 = vpack.c.b16 %v1551, %v1550
        %v1590 = vpack.c.b16 %v1553, %v1552
        %v1591 = vpack.c.b16 %v1555, %v1554
        %v1592 = vpack.c.b16 %v1557, %v1556
        %v1593 = vpack.c.b16 %v1559, %v1558
        %v1594 = vpack.c.b16 %v1561, %v1560
        %v1595 = vpack.c.b16 %v1563, %v1562
        %1628 = vmatpush.bf16.msra.mxu0 %v1571
        %1629 = vmatpush.bf16.msra.mxu0 %v1570
        %1630 = vmatpush.bf16.msra.mxu0 %v1569
        %1631 = vmatpush.bf16.msra.mxu0 %v1568
        %1632 = vmatpush.bf16.msra.mxu0 %v1567
        %1633 = vmatpush.bf16.msra.mxu0 %v1566
        %1634 = vmatpush.bf16.msra.mxu0 %v1565
        %1635 = vmatpush.bf16.msra.mxu0 %v1564
        %1636 = vmatmul.bf16.gmra.mxu0 %v1340
        %v1637 = vpop.f32.mrf.mxu0
        %v1638 = vadd.f32 0.0, %v1637
        %v1639 = vpop.f32.mrf.mxu0
        %v1640 = vadd.f32 0.0, %v1639
        %1641 = vmatmul.bf16.gmra.mxu0 %v1344
        %v1642 = vpop.f32.mrf.mxu0
        %v1643 = vadd.f32 0.0, %v1642
        %v1644 = vpop.f32.mrf.mxu0
        %v1645 = vadd.f32 0.0, %v1644
        %1646 = vmatmul.bf16.gmra.mxu0 %v1348
        %v1647 = vpop.f32.mrf.mxu0
        %v1648 = vadd.f32 0.0, %v1647
        %v1649 = vpop.f32.mrf.mxu0
        %v1650 = vadd.f32 0.0, %v1649
        %1651 = vmatmul.bf16.gmra.mxu0 %v1352
        %v1652 = vpop.f32.mrf.mxu0
        %v1653 = vadd.f32 0.0, %v1652
        %v1654 = vpop.f32.mrf.mxu0
        %v1655 = vadd.f32 0.0, %v1654
        %1656 = vmatmul.bf16.gmra.mxu0 %v1356
        %v1657 = vpop.f32.mrf.mxu0
        %v1658 = vadd.f32 0.0, %v1657
        %v1659 = vpop.f32.mrf.mxu0
        %v1660 = vadd.f32 0.0, %v1659
        %1661 = vmatmul.bf16.gmra.mxu0 %v1360
        %v1662 = vpop.f32.mrf.mxu0
        %v1663 = vadd.f32 0.0, %v1662
        %v1664 = vpop.f32.mrf.mxu0
        %v1665 = vadd.f32 0.0, %v1664
        %1666 = vmatmul.bf16.gmra.mxu0 %v1364
        %v1667 = vpop.f32.mrf.mxu0
        %v1668 = vadd.f32 0.0, %v1667
        %v1669 = vpop.f32.mrf.mxu0
        %v1670 = vadd.f32 0.0, %v1669
        %1671 = vmatmul.bf16.gmra.mxu0 %v1368
        %v1672 = vpop.f32.mrf.mxu0
        %v1673 = vadd.f32 0.0, %v1672
        %v1674 = vpop.f32.mrf.mxu0
        %v1675 = vadd.f32 0.0, %v1674
        %1676 = vdwg.mxu0
        %1677 = vmatpush.bf16.msra.mxu0 %v1579
        %1678 = vmatpush.bf16.msra.mxu0 %v1578
        %1679 = vmatpush.bf16.msra.mxu0 %v1577
        %1680 = vmatpush.bf16.msra.mxu0 %v1576
        %1681 = vmatpush.bf16.msra.mxu0 %v1575
        %1682 = vmatpush.bf16.msra.mxu0 %v1574
        %1683 = vmatpush.bf16.msra.mxu0 %v1573
        %1684 = vmatpush.bf16.msra.mxu0 %v1572
        %1685 = vmatmul.bf16.gmra.mxu0 %v1341
        %v1686 = vpop.f32.mrf.mxu0
        %v1687 = vadd.f32 %v1638, %v1686
        %v1688 = vpop.f32.mrf.mxu0
        %v1689 = vadd.f32 %v1640, %v1688
        %1690 = vmatmul.bf16.gmra.mxu0 %v1345
        %v1691 = vpop.f32.mrf.mxu0
        %v1692 = vadd.f32 %v1643, %v1691
        %v1693 = vpop.f32.mrf.mxu0
        %v1694 = vadd.f32 %v1645, %v1693
        %1695 = vmatmul.bf16.gmra.mxu0 %v1349
        %v1696 = vpop.f32.mrf.mxu0
        %v1697 = vadd.f32 %v1648, %v1696
        %v1698 = vpop.f32.mrf.mxu0
        %v1699 = vadd.f32 %v1650, %v1698
        %1700 = vmatmul.bf16.gmra.mxu0 %v1353
        %v1701 = vpop.f32.mrf.mxu0
        %v1702 = vadd.f32 %v1653, %v1701
        %v1703 = vpop.f32.mrf.mxu0
        %v1704 = vadd.f32 %v1655, %v1703
        %1705 = vmatmul.bf16.gmra.mxu0 %v1357
        %v1706 = vpop.f32.mrf.mxu0
        %v1707 = vadd.f32 %v1658, %v1706
        %v1708 = vpop.f32.mrf.mxu0
        %v1709 = vadd.f32 %v1660, %v1708
        %1710 = vmatmul.bf16.gmra.mxu0 %v1361
        %v1711 = vpop.f32.mrf.mxu0
        %v1712 = vadd.f32 %v1663, %v1711
        %v1713 = vpop.f32.mrf.mxu0
        %v1714 = vadd.f32 %v1665, %v1713
        %1715 = vmatmul.bf16.gmra.mxu0 %v1365
        %v1716 = vpop.f32.mrf.mxu0
        %v1717 = vadd.f32 %v1668, %v1716
        %v1718 = vpop.f32.mrf.mxu0
        %v1719 = vadd.f32 %v1670, %v1718
        %1720 = vmatmul.bf16.gmra.mxu0 %v1369
        %v1721 = vpop.f32.mrf.mxu0
        %v1722 = vadd.f32 %v1673, %v1721
        %v1723 = vpop.f32.mrf.mxu0
        %v1724 = vadd.f32 %v1675, %v1723
        %1725 = vdwg.mxu0
        %1726 = vmatpush.bf16.msra.mxu0 %v1587
        %1727 = vmatpush.bf16.msra.mxu0 %v1586
        %1728 = vmatpush.bf16.msra.mxu0 %v1585
        %1729 = vmatpush.bf16.msra.mxu0 %v1584
        %1730 = vmatpush.bf16.msra.mxu0 %v1583
        %1731 = vmatpush.bf16.msra.mxu0 %v1582
        %1732 = vmatpush.bf16.msra.mxu0 %v1581
        %1733 = vmatpush.bf16.msra.mxu0 %v1580
        %1734 = vmatmul.bf16.gmra.mxu0 %v1342
        %v1735 = vpop.f32.mrf.mxu0
        %v1736 = vadd.f32 %v1687, %v1735
        %v1737 = vpop.f32.mrf.mxu0
        %v1738 = vadd.f32 %v1689, %v1737
        %1739 = vmatmul.bf16.gmra.mxu0 %v1346
        %v1740 = vpop.f32.mrf.mxu0
        %v1741 = vadd.f32 %v1692, %v1740
        %v1742 = vpop.f32.mrf.mxu0
        %v1743 = vadd.f32 %v1694, %v1742
        %1744 = vmatmul.bf16.gmra.mxu0 %v1350
        %v1745 = vpop.f32.mrf.mxu0
        %v1746 = vadd.f32 %v1697, %v1745
        %v1747 = vpop.f32.mrf.mxu0
        %v1748 = vadd.f32 %v1699, %v1747
        %1749 = vmatmul.bf16.gmra.mxu0 %v1354
        %v1750 = vpop.f32.mrf.mxu0
        %v1751 = vadd.f32 %v1702, %v1750
        %v1752 = vpop.f32.mrf.mxu0
        %v1753 = vadd.f32 %v1704, %v1752
        %1754 = vmatmul.bf16.gmra.mxu0 %v1358
        %v1755 = vpop.f32.mrf.mxu0
        %v1756 = vadd.f32 %v1707, %v1755
        %v1757 = vpop.f32.mrf.mxu0
        %v1758 = vadd.f32 %v1709, %v1757
        %1759 = vmatmul.bf16.gmra.mxu0 %v1362
        %v1760 = vpop.f32.mrf.mxu0
        %v1761 = vadd.f32 %v1712, %v1760
        %v1762 = vpop.f32.mrf.mxu0
        %v1763 = vadd.f32 %v1714, %v1762
        %1764 = vmatmul.bf16.gmra.mxu0 %v1366
        %v1765 = vpop.f32.mrf.mxu0
        %v1766 = vadd.f32 %v1717, %v1765
        %v1767 = vpop.f32.mrf.mxu0
        %v1768 = vadd.f32 %v1719, %v1767
        %1769 = vmatmul.bf16.gmra.mxu0 %v1370
        %v1770 = vpop.f32.mrf.mxu0
        %v1771 = vadd.f32 %v1722, %v1770
        %v1772 = vpop.f32.mrf.mxu0
        %v1773 = vadd.f32 %v1724, %v1772
        %1774 = vdwg.mxu0
        %1775 = vmatpush.bf16.msra.mxu0 %v1595
        %1776 = vmatpush.bf16.msra.mxu0 %v1594
        %1777 = vmatpush.bf16.msra.mxu0 %v1593
        %1778 = vmatpush.bf16.msra.mxu0 %v1592
        %1779 = vmatpush.bf16.msra.mxu0 %v1591
        %1780 = vmatpush.bf16.msra.mxu0 %v1590
        %1781 = vmatpush.bf16.msra.mxu0 %v1589
        %1782 = vmatpush.bf16.msra.mxu0 %v1588
        %1783 = vmatmul.bf16.gmra.mxu0 %v1343
        %v1784 = vpop.f32.mrf.mxu0
        %v1785 = vadd.f32 %v1736, %v1784
        %v1786 = vpop.f32.mrf.mxu0
        %v1787 = vadd.f32 %v1738, %v1786
        %1788 = vmatmul.bf16.gmra.mxu0 %v1347
        %v1789 = vpop.f32.mrf.mxu0
        %v1790 = vadd.f32 %v1741, %v1789
        %v1791 = vpop.f32.mrf.mxu0
        %v1792 = vadd.f32 %v1743, %v1791
        %1793 = vmatmul.bf16.gmra.mxu0 %v1351
        %v1794 = vpop.f32.mrf.mxu0
        %v1795 = vadd.f32 %v1746, %v1794
        %v1796 = vpop.f32.mrf.mxu0
        %v1797 = vadd.f32 %v1748, %v1796
        %1798 = vmatmul.bf16.gmra.mxu0 %v1355
        %v1799 = vpop.f32.mrf.mxu0
        %v1800 = vadd.f32 %v1751, %v1799
        %v1801 = vpop.f32.mrf.mxu0
        %v1802 = vadd.f32 %v1753, %v1801
        %1803 = vmatmul.bf16.gmra.mxu0 %v1359
        %v1804 = vpop.f32.mrf.mxu0
        %v1805 = vadd.f32 %v1756, %v1804
        %v1806 = vpop.f32.mrf.mxu0
        %v1807 = vadd.f32 %v1758, %v1806
        %1808 = vmatmul.bf16.gmra.mxu0 %v1363
        %v1809 = vpop.f32.mrf.mxu0
        %v1810 = vadd.f32 %v1761, %v1809
        %v1811 = vpop.f32.mrf.mxu0
        %v1812 = vadd.f32 %v1763, %v1811
        %1813 = vmatmul.bf16.gmra.mxu0 %v1367
        %v1814 = vpop.f32.mrf.mxu0
        %v1815 = vadd.f32 %v1766, %v1814
        %v1816 = vpop.f32.mrf.mxu0
        %v1817 = vadd.f32 %v1768, %v1816
        %1818 = vmatmul.bf16.gmra.mxu0 %v1371
        %v1819 = vpop.f32.mrf.mxu0
        %v1820 = vadd.f32 %v1771, %v1819
        %v1821 = vpop.f32.mrf.mxu0
        %v1822 = vadd.f32 %v1773, %v1821
        %1823 = vdwg.mxu0
        %v1824 = vadd.f32 %v1324, %v1785
        %v1825 = vadd.f32 %v1325, %v1787
        %v1826 = vadd.f32 %v1326, %v1790
        %v1827 = vadd.f32 %v1327, %v1792
        %v1828 = vadd.f32 %v1328, %v1795
        %v1829 = vadd.f32 %v1329, %v1797
        %v1830 = vadd.f32 %v1330, %v1800
        %v1831 = vadd.f32 %v1331, %v1802
        %v1832 = vadd.f32 %v1332, %v1805
        %v1833 = vadd.f32 %v1333, %v1807
        %v1834 = vadd.f32 %v1334, %v1810
        %v1835 = vadd.f32 %v1335, %v1812
        %v1836 = vadd.f32 %v1336, %v1815
        %v1837 = vadd.f32 %v1337, %v1817
        %v1838 = vadd.f32 %v1338, %v1820
        %v1839 = vadd.f32 %v1339, %v1822
        %1840 = vst [vmem:[#allocation4] sm:$0xff] %v1824
        %1841 = vst [vmem:[#allocation4 + $0x8] sm:$0xff] %v1825
        %1842 = vst [vmem:[#allocation4 + $0x10] sm:$0xff] %v1826
        %1843 = vst [vmem:[#allocation4 + $0x18] sm:$0xff] %v1827
        %1844 = vst [vmem:[#allocation4 + $0x20] sm:$0xff] %v1828
        %1845 = vst [vmem:[#allocation4 + $0x28] sm:$0xff] %v1829
        %1846 = vst [vmem:[#allocation4 + $0x30] sm:$0xff] %v1830
        %1847 = vst [vmem:[#allocation4 + $0x38] sm:$0xff] %v1831
        %1848 = vst [vmem:[#allocation4 + $0x40] sm:$0xff] %v1832
        %1849 = vst [vmem:[#allocation4 + $0x48] sm:$0xff] %v1833
        %1850 = vst [vmem:[#allocation4 + $0x50] sm:$0xff] %v1834
        %1851 = vst [vmem:[#allocation4 + $0x58] sm:$0xff] %v1835
        %1852 = vst [vmem:[#allocation4 + $0x60] sm:$0xff] %v1836
        %1853 = vst [vmem:[#allocation4 + $0x68] sm:$0xff] %v1837
        %1854 = vst [vmem:[#allocation4 + $0x70] sm:$0xff] %v1838
        %1855 = vst [vmem:[#allocation4 + $0x78] sm:$0xff] %v1839
        // Predicated region
        $region65: #{_moe_forward_impl.1} parent=43 // pred_check
          %p1856 = pneg %p432
        $region66: #{_moe_forward_impl.1} parent=43 // pred_check_branch
          %1858 = sbr.rel (%p1856) target = $region68
        $region67: #{_moe_forward_impl.1} parent=43 // pred_region
          %v1859 = vlaneseq
          %v1860 = vand.u32 %v1859, 127
          %v1861 = vstv %s32
          %vm1862 = vcmp.eq.s32.totalorder %v1860, %v1861
          %v1863 = vld [vmem:[#allocation3] sm:$0xff]
          %v1864 = vld [vmem:[#allocation3 + $0x8] sm:$0xff]
          %v1865 = vld [vmem:[#allocation3 + $0x10] sm:$0xff]
          %v1866 = vld [vmem:[#allocation3 + $0x18] sm:$0xff]
          %v1867 = vld [vmem:[#allocation3 + $0x20] sm:$0xff]
          %v1868 = vld [vmem:[#allocation3 + $0x28] sm:$0xff]
          %v1869 = vld [vmem:[#allocation3 + $0x30] sm:$0xff]
          %v1870 = vld [vmem:[#allocation3 + $0x38] sm:$0xff]
          %v1871 = vld [vmem:[#allocation3 + $0x40] sm:$0xff]
          %v1872 = vld [vmem:[#allocation3 + $0x48] sm:$0xff]
          %v1873 = vld [vmem:[#allocation3 + $0x50] sm:$0xff]
          %v1874 = vld [vmem:[#allocation3 + $0x58] sm:$0xff]
          %v1875 = vld [vmem:[#allocation3 + $0x60] sm:$0xff]
          %v1876 = vld [vmem:[#allocation3 + $0x68] sm:$0xff]
          %v1877 = vld [vmem:[#allocation3 + $0x70] sm:$0xff]
          %v1878 = vld [vmem:[#allocation3 + $0x78] sm:$0xff]
          %v1879 = vsel %vm1862, 1, 0
          %v1880 = vcvt.s32.f32 %v1879
          %v1881 = vmul.f32 %v1863, %v1880
          %v1882 = vmul.f32 %v1864, %v1880
          %v1883 = vmul.f32 %v1865, %v1880
          %v1884 = vmul.f32 %v1866, %v1880
          %v1885 = vmul.f32 %v1867, %v1880
          %v1886 = vmul.f32 %v1868, %v1880
          %v1887 = vmul.f32 %v1869, %v1880
          %v1888 = vmul.f32 %v1870, %v1880
          %v1889 = vmul.f32 %v1871, %v1880
          %v1890 = vmul.f32 %v1872, %v1880
          %v1891 = vmul.f32 %v1873, %v1880
          %v1892 = vmul.f32 %v1874, %v1880
          %v1893 = vmul.f32 %v1875, %v1880
          %v1894 = vmul.f32 %v1876, %v1880
          %v1895 = vmul.f32 %v1877, %v1880
          %v1896 = vmul.f32 %v1878, %v1880
          %vm1897 = vcmask 64512
          %v1898 = vsel %vm1897, %v1881, 0.0
          %1899 = vadd.xlane.f32.xlu0 %v1898
          %v1900 = vpop.xlane.xlu0 %1899
          %v1901 = vsel %vm1897, %v1882, 0.0
          %1902 = vadd.xlane.f32.xlu0 %v1901
          %v1903 = vpop.xlane.xlu0 %1902
          %v1904 = vsel %vm1897, %v1883, 0.0
          %1905 = vadd.xlane.f32.xlu0 %v1904
          %v1906 = vpop.xlane.xlu0 %1905
          %v1907 = vsel %vm1897, %v1884, 0.0
          %1908 = vadd.xlane.f32.xlu0 %v1907
          %v1909 = vpop.xlane.xlu0 %1908
          %v1910 = vsel %vm1897, %v1885, 0.0
          %1911 = vadd.xlane.f32.xlu0 %v1910
          %v1912 = vpop.xlane.xlu0 %1911
          %v1913 = vsel %vm1897, %v1886, 0.0
          %1914 = vadd.xlane.f32.xlu0 %v1913
          %v1915 = vpop.xlane.xlu0 %1914
          %v1916 = vsel %vm1897, %v1887, 0.0
          %1917 = vadd.xlane.f32.xlu0 %v1916
          %v1918 = vpop.xlane.xlu0 %1917
          %v1919 = vsel %vm1897, %v1888, 0.0
          %1920 = vadd.xlane.f32.xlu0 %v1919
          %v1921 = vpop.xlane.xlu0 %1920
          %v1922 = vsel %vm1897, %v1889, 0.0
          %1923 = vadd.xlane.f32.xlu0 %v1922
          %v1924 = vpop.xlane.xlu0 %1923
          %v1925 = vsel %vm1897, %v1890, 0.0
          %1926 = vadd.xlane.f32.xlu0 %v1925
          %v1927 = vpop.xlane.xlu0 %1926
          %v1928 = vsel %vm1897, %v1891, 0.0
          %1929 = vadd.xlane.f32.xlu0 %v1928
          %v1930 = vpop.xlane.xlu0 %1929
          %v1931 = vsel %vm1897, %v1892, 0.0
          %1932 = vadd.xlane.f32.xlu0 %v1931
          %v1933 = vpop.xlane.xlu0 %1932
          %v1934 = vsel %vm1897, %v1893, 0.0
          %1935 = vadd.xlane.f32.xlu0 %v1934
          %v1936 = vpop.xlane.xlu0 %1935
          %v1937 = vsel %vm1897, %v1894, 0.0
          %1938 = vadd.xlane.f32.xlu0 %v1937
          %v1939 = vpop.xlane.xlu0 %1938
          %v1940 = vsel %vm1897, %v1895, 0.0
          %1941 = vadd.xlane.f32.xlu0 %v1940
          %v1942 = vpop.xlane.xlu0 %1941
          %v1943 = vsel %vm1897, %v1896, 0.0
          %1944 = vadd.xlane.f32.xlu0 %v1943
          %v1945 = vpop.xlane.xlu0 %1944
          %v1946 = vld [vmem:[%s414] sm:$0xff]
          %v1947 = vld [vmem:[%s414 + $0x8] sm:$0xff]
          %v1948 = vld [vmem:[%s414 + $0x10] sm:$0xff]
          %v1949 = vld [vmem:[%s414 + $0x18] sm:$0xff]
          %v1950 = vld [vmem:[%s414 + $0x20] sm:$0xff]
          %v1951 = vld [vmem:[%s414 + $0x28] sm:$0xff]
          %v1952 = vld [vmem:[%s414 + $0x30] sm:$0xff]
          %v1953 = vld [vmem:[%s414 + $0x38] sm:$0xff]
          %v1954 = vld [vmem:[%s414 + $0x40] sm:$0xff]
          %v1955 = vld [vmem:[%s414 + $0x48] sm:$0xff]
          %v1956 = vld [vmem:[%s414 + $0x50] sm:$0xff]
          %v1957 = vld [vmem:[%s414 + $0x58] sm:$0xff]
          %v1958 = vld [vmem:[%s414 + $0x60] sm:$0xff]
          %v1959 = vld [vmem:[%s414 + $0x68] sm:$0xff]
          %v1960 = vld [vmem:[%s414 + $0x70] sm:$0xff]
          %v1961 = vld [vmem:[%s414 + $0x78] sm:$0xff]
          %v1962 = vld [vmem:[#allocation4] sm:$0xff]
          %v1963 = vld [vmem:[#allocation4 + $0x8] sm:$0xff]
          %v1964 = vld [vmem:[#allocation4 + $0x10] sm:$0xff]
          %v1965 = vld [vmem:[#allocation4 + $0x18] sm:$0xff]
          %v1966 = vld [vmem:[#allocation4 + $0x20] sm:$0xff]
          %v1967 = vld [vmem:[#allocation4 + $0x28] sm:$0xff]
          %v1968 = vld [vmem:[#allocation4 + $0x30] sm:$0xff]
          %v1969 = vld [vmem:[#allocation4 + $0x38] sm:$0xff]
          %v1970 = vld [vmem:[#allocation4 + $0x40] sm:$0xff]
          %v1971 = vld [vmem:[#allocation4 + $0x48] sm:$0xff]
          %v1972 = vld [vmem:[#allocation4 + $0x50] sm:$0xff]
          %v1973 = vld [vmem:[#allocation4 + $0x58] sm:$0xff]
          %v1974 = vld [vmem:[#allocation4 + $0x60] sm:$0xff]
          %v1975 = vld [vmem:[#allocation4 + $0x68] sm:$0xff]
          %v1976 = vld [vmem:[#allocation4 + $0x70] sm:$0xff]
          %v1977 = vld [vmem:[#allocation4 + $0x78] sm:$0xff]
          %v1978 = vmul.f32 %v1900, %v1962
          %v1979 = vmul.f32 %v1903, %v1963
          %v1980 = vmul.f32 %v1906, %v1964
          %v1981 = vmul.f32 %v1909, %v1965
          %v1982 = vmul.f32 %v1912, %v1966
          %v1983 = vmul.f32 %v1915, %v1967
          %v1984 = vmul.f32 %v1918, %v1968
          %v1985 = vmul.f32 %v1921, %v1969
          %v1986 = vmul.f32 %v1924, %v1970
          %v1987 = vmul.f32 %v1927, %v1971
          %v1988 = vmul.f32 %v1930, %v1972
          %v1989 = vmul.f32 %v1933, %v1973
          %v1990 = vmul.f32 %v1936, %v1974
          %v1991 = vmul.f32 %v1939, %v1975
          %v1992 = vmul.f32 %v1942, %v1976
          %v1993 = vmul.f32 %v1945, %v1977
          %v1994 = vadd.f32 %v1946, %v1978
          %v1995 = vadd.f32 %v1947, %v1979
          %v1996 = vadd.f32 %v1948, %v1980
          %v1997 = vadd.f32 %v1949, %v1981
          %v1998 = vadd.f32 %v1950, %v1982
          %v1999 = vadd.f32 %v1951, %v1983
          %v2000 = vadd.f32 %v1952, %v1984
          %v2001 = vadd.f32 %v1953, %v1985
          %v2002 = vadd.f32 %v1954, %v1986
          %v2003 = vadd.f32 %v1955, %v1987
          %v2004 = vadd.f32 %v1956, %v1988
          %v2005 = vadd.f32 %v1957, %v1989
          %v2006 = vadd.f32 %v1958, %v1990
          %v2007 = vadd.f32 %v1959, %v1991
          %v2008 = vadd.f32 %v1960, %v1992
          %v2009 = vadd.f32 %v1961, %v1993
          %2010 = vst [vmem:[%s414] sm:$0xff] %v1994
          %2011 = vst [vmem:[%s414 + $0x8] sm:$0xff] %v1995
          %2012 = vst [vmem:[%s414 + $0x10] sm:$0xff] %v1996
          %2013 = vst [vmem:[%s414 + $0x18] sm:$0xff] %v1997
          %2014 = vst [vmem:[%s414 + $0x20] sm:$0xff] %v1998
          %2015 = vst [vmem:[%s414 + $0x28] sm:$0xff] %v1999
          %2016 = vst [vmem:[%s414 + $0x30] sm:$0xff] %v2000
          %2017 = vst [vmem:[%s414 + $0x38] sm:$0xff] %v2001
          %2018 = vst [vmem:[%s414 + $0x40] sm:$0xff] %v2002
          %2019 = vst [vmem:[%s414 + $0x48] sm:$0xff] %v2003
          %2020 = vst [vmem:[%s414 + $0x50] sm:$0xff] %v2004
          %2021 = vst [vmem:[%s414 + $0x58] sm:$0xff] %v2005
          %2022 = vst [vmem:[%s414 + $0x60] sm:$0xff] %v2006
          %2023 = vst [vmem:[%s414 + $0x68] sm:$0xff] %v2007
          %2024 = vst [vmem:[%s414 + $0x70] sm:$0xff] %v2008
          %2025 = vst [vmem:[%s414 + $0x78] sm:$0xff] %v2009
        $region68: #{_moe_forward_impl.1} parent=43 // pred_fallthru
          _
        %s2026 = sand.u32 %s210, 1
        %s2027 = scalar_lea.sflag [#allocation7], %s2026
        %s2028 = sand.u32 %s210, 1
        %s2029 = smul.addr %s2028, 128
        %s2030 = scalar_lea.vmem [#allocation11], %s2029
        // Predicated region
        $region69: #{_moe_forward_impl.1} parent=43 // pred_check
          %p2031 = pneg %p220
        $region70: #{_moe_forward_impl.1} parent=43 // pred_check_branch
          %2033 = sbr.rel (%p2031) target = $region72
        $region71: #{_moe_forward_impl.1} parent=43 // pred_region
          %s2034 = smul.u32 16, %s31
          %2036 = vsyncadd %s2027, 0
          %s2037 = smul.addr %s2034, 8
          %s2038 = scalar_lea.hbm %s6, %s2037
          %s2039 = sshll.u32 %s2030, 4
          %s2040 = int_to_ptr.vmem [resolvable:$true] %s2039
          %s2041 = sshll.u32 %s2038, 4
          %s2042 = int_to_ptr.hbm [resolvable:$true] %s2041
          %2047 = dma.vmem_to_hbm [thread:$0]  %s2040, 2048, %s2042, %s2027, 128, 128, 8
        $region72: #{_moe_forward_impl.1} parent=43 // pred_fallthru
          _
      $region44: #{_moe_forward_impl.1} parent=5 // pred_fallthru
        _
      %p2048 = scmp.le.s32.totalorder 2, %s21
      // Predicated region
      $region73: #{_moe_forward_impl.1} parent=5 // pred_check
        %p2049 = pneg %p2048
      $region74: #{_moe_forward_impl.1} parent=5 // pred_check_branch
        %2051 = sbr.rel (%p2049) target = $region76
      $region75: #{_moe_forward_impl.1} parent=5 // pred_region
        %s2052 = ssub.s32 %s21, 2
        // Predicated region
        $region77: #{_moe_forward_impl.1} parent=75 // pred_check
          %p2053 = pneg %p226
        $region78: #{_moe_forward_impl.1} parent=75 // pred_check_branch
          %2055 = sbr.rel (%p2053) target = $region80
        $region79: #{_moe_forward_impl.1} parent=75 // pred_region
          %s2056 = sand.u32 %s211, 1
          %s2057 = scalar_lea.sflag [#allocation7], %s2056
          %s2058 = sand.u32 %s211, 1
          %s2059 = smul.addr %s2058, 128
          %s2060 = scalar_lea.vmem [#allocation11], %s2059
          %2062 = dma.done %s2057, 2048
        $region80: #{_moe_forward_impl.1} parent=75 // pred_fallthru
          _
      $region76: #{_moe_forward_impl.1} parent=5 // pred_fallthru
        _
    $region6: #{_moe_forward_impl.1} parent=1 // loop_footer
      %s25 = sadd.s32 1, %s21
    $region7: #{_moe_forward_impl.1} parent=1 // loop_footer_branch
      %20 = sbr.rel target = $region3
    $region8: #{_moe_forward_impl.1} parent=1 // loop_exit
      _
    %2063 = vsyncpa [#allocation6], 1
    %s2064 = scalar_lea.sflag [#allocation6], 1
    %2065 = vsyncpa %s2064, 1
    %2066 = vsyncpa [#allocation9], 1
    %s2067 = scalar_lea.sflag [#allocation9], 1
    %2068 = vsyncpa %s2067, 1
    %2069 = vsyncpa [#allocation7], 1
    %s2070 = scalar_lea.sflag [#allocation7], 1
    %2071 = vsyncpa %s2070, 1

</llo_original>
